<compile_context>
chip_gen: v7x
topology: tpu7x:2x2x1
jax: 0.10.0
libtpu: 0.0.40
codegen_flags: <defaults>
</compile_context>

<pallas_src>
import jax
import jax.numpy as jnp
import numpy as np
from jax.experimental import pallas as pl
from jax.experimental.pallas import tpu as pltpu


# ----------------------------------------------------------------------------------
# Shared GRU gate math (PyTorch nn.GRU semantics; gx/gh are [rows, 3d], order r,z,n).
# Pure jnp: usable inside the Pallas kernel and in the pure-JAX reference.
# ----------------------------------------------------------------------------------
def _gru_gates(gx, gh, h, d):
    r = jax.nn.sigmoid(gx[:, 0:d] + gh[:, 0:d])
    z = jax.nn.sigmoid(gx[:, d:2 * d] + gh[:, d:2 * d])
    n = jnp.tanh(gx[:, 2 * d:3 * d] + r * gh[:, 2 * d:3 * d])
    return (1.0 - z) * n + z * h


# ----------------------------------------------------------------------------------
# Fused Pallas kernel: valueEmbedding + encoder GRU + decoder GRU step + predict.
# ----------------------------------------------------------------------------------
def segrnn_fused_kernel(x_ref, pos_ref,
                        w_emb_ref, b_emb_ref,
                        w_ih_ref, w_hh_ref, b_ih_ref, b_hh_ref,
                        w_pred_ref, b_pred_ref,
                        y_ref, gx_ref):
    """Process one (batch element, channel tile) block.

    x_ref   : [1, Nt, seq_len]  f32   lane-dense time axis
    pos_ref : [Nt, seg_num_y*d] f32   per-channel pos/channel embeddings (flattened)
    weights : bf16 (matmul operands), biases f32
    y_ref   : [1, Nt, pred_len] f32   lane-dense forecast per channel row
    gx_ref  : VMEM scratch [seg_num_x, Nt, 3d] f32 (precomputed input-gate terms)
    """
    nt = x_ref.shape[1]
    seg_len, d = w_emb_ref.shape
    sx = gx_ref.shape[0]
    sy = pos_ref.shape[1] // d

    w_emb = w_emb_ref[...]        # bf16 [seg_len, d]
    b_emb = b_emb_ref[...]        # f32  [1, d]
    w_ih = w_ih_ref[...]          # bf16 [d, 3d]
    w_hh = w_hh_ref[...]          # bf16 [d, 3d]
    b_ih = b_ih_ref[...]          # f32  [1, 3d]
    b_hh = b_hh_ref[...]          # f32  [1, 3d]

    x = x_ref[0]                  # f32 [Nt, seq_len]

    # ---- phase 1: time-invariant matmuls, hoisted off the recurrence ------------
    # valueEmbedding (Linear+ReLU) and the x-side GRU matmul for every segment.
    for t in range(sx):           # static; each result is stored, bounding live ranges
        xt = x[:, t * seg_len:(t + 1) * seg_len].astype(jnp.bfloat16)
        e = jnp.maximum(
            jnp.dot(xt, w_emb, preferred_element_type=jnp.float32) + b_emb, 0.0)
        gx_ref[t] = (jnp.dot(e.astype(jnp.bfloat16), w_ih,
                             preferred_element_type=jnp.float32) + b_ih)

    # ---- phase 2: serial recurrence — exactly one matmul (h @ W_hh) per step ----
    def step(t, h):
        gh = (jnp.dot(h.astype(jnp.bfloat16), w_hh,
                      preferred_element_type=jnp.float32) + b_hh)
        return _gru_gates(gx_ref[t], gh, h, d)

    h0 = jnp.zeros((nt, d), jnp.float32)
    hn = jax.lax.fori_loop(0, sx, step, h0, unroll=(sx <= 8))

    # ---- phase 3: decoder — seg_num_y independent single GRU steps + predict ----
    # Every decoder "segment" uses the SAME hn (hn.repeat semantics of the module),
    # so the h-side matmul is shared across all seg_num_y steps.
    pos = pos_ref[...]            # f32 [Nt, sy*d]
    w_pred = w_pred_ref[...]      # bf16 [d, seg_len]
    b_pred = b_pred_ref[...]      # f32  [1, seg_len]
    gh_dec = (jnp.dot(hn.astype(jnp.bfloat16), w_hh,
                      preferred_element_type=jnp.float32) + b_hh)
    ys = []
    for s in range(sy):
        p = pos[:, s * d:(s + 1) * d].astype(jnp.bfloat16)
        gx = jnp.dot(p, w_ih, preferred_element_type=jnp.float32) + b_ih
        hy = _gru_gates(gx, gh_dec, hn, d)
        ys.append(jnp.dot(hy.astype(jnp.bfloat16), w_pred,
                          preferred_element_type=jnp.float32) + b_pred)
    # single lane-dense store of the whole [Nt, pred_len] slab
    y_ref[0] = jnp.concatenate(ys, axis=1)


# ----------------------------------------------------------------------------------
# Parameters (deterministic, PyTorch-like init; synthetic — no checkpoint load)
# ----------------------------------------------------------------------------------
def init_params(key, seq_len, pred_len, seg_len, d_model, enc_in):
    seg_num_y = pred_len // seg_len
    ks = jax.random.split(key, 10)

    def u(k, shape, fan_in):
        lim = 1.0 / np.sqrt(fan_in)
        return jax.random.uniform(k, shape, jnp.float32, -lim, lim)

    d = d_model
    return dict(
        # valueEmbedding: Linear(seg_len, d_model), stored transposed for x @ W
        w_emb=u(ks[0], (seg_len, d), seg_len),
        b_emb=u(ks[1], (1, d), seg_len),
        # GRU weights, fused & transposed; gate order (r, z, n) along the 3d columns
        w_ih=u(ks[2], (d, 3 * d), d),
        w_hh=u(ks[3], (d, 3 * d), d),
        b_ih=u(ks[4], (1, 3 * d), d),
        b_hh=u(ks[5], (1, 3 * d), d),
        # pos_emb / channel_emb ~ randn, like nn.Parameter(torch.randn(...))
        pos_emb=jax.random.normal(ks[6], (seg_num_y, d // 2), jnp.float32),
        channel_emb=jax.random.normal(ks[7], (enc_in, d // 2), jnp.float32),
        # predict: Linear(d_model, seg_len), transposed for h @ W
        w_pred=u(ks[8], (d, seg_len), d),
        b_pred=u(ks[9], (1, seg_len), d),
    )


# ----------------------------------------------------------------------------------
# Wrapper-side glue (normalization, transposes, pos/channel embedding table)
# ----------------------------------------------------------------------------------
def _round_up(x, m):
    return ((x + m - 1) // m) * m


def _prepare(history_data, params, seg_len, pred_len, d_model):
    x_enc = history_data[..., 0].astype(jnp.float32)        # [B, L, N]
    _, _, N = x_enc.shape
    sy = pred_len // seg_len
    seq_last = x_enc[:, -1:, :]                              # [B, 1, N]
    xw = (x_enc - seq_last).transpose(0, 2, 1)               # [B, N, L]  lane = time
    # row n of pos3 = [concat(pos_emb[s], channel_emb[n]) for s in range(sy)]
    pos3 = jnp.concatenate([
        jnp.tile(params['pos_emb'][None, :, :], (N, 1, 1)),             # [N, sy, d/2]
        jnp.tile(params['channel_emb'][:, None, :], (1, sy, 1)),        # [N, sy, d/2]
    ], axis=-1)                                              # [N, sy, d]
    return xw, pos3, seq_last


def segrnn_forward(history_data, params, *, seq_len, pred_len, seg_len, d_model,
                   enc_in, row_tile=64):
    del seq_len, enc_in  # inferred from the data
    xw, pos3, seq_last = _prepare(history_data, params, seg_len, pred_len, d_model)
    B, N, L = xw.shape
    d = d_model
    sx = L // seg_len
    sy = pred_len // seg_len

    # Channel-row tiling: biggest tile <= row_tile, multiple of 8 (sublane tiling);
    # pad N up so every block is full.  Keep (inputs*2 dbl-buf + weights + gx scratch)
    # well under the default 32 MiB scoped VMEM so it also fits v7x's 64 MiB budget.
    nt = min(row_tile, _round_up(N, 8))
    n_pad = _round_up(N, nt)
    xw_p = jnp.pad(xw, ((0, 0), (0, n_pad - N), (0, 0)))
    pos_p = jnp.pad(pos3.reshape(N, sy * d), ((0, n_pad - N), (0, 0)))

    bf = lambda a: a.astype(jnp.bfloat16)
    grid = (B, n_pad // nt)

    def const(shape):
        return pl.BlockSpec(shape, lambda b, j: (0,) * len(shape))

    y_pad = pl.pallas_call(
        segrnn_fused_kernel,
        out_shape=jax.ShapeDtypeStruct((B, n_pad, pred_len), jnp.float32),
        grid=grid,
        in_specs=[
            pl.BlockSpec((1, nt, L), lambda b, j: (b, j, 0)),           # x (lane-dense)
            pl.BlockSpec((nt, sy * d), lambda b, j: (j, 0)),            # pos table
            const((seg_len, d)),                                        # w_emb  (bf16)
            const((1, d)),                                              # b_emb  (f32)
            const((d, 3 * d)),                                          # w_ih   (bf16)
            const((d, 3 * d)),                                          # w_hh   (bf16)
            const((1, 3 * d)),                                          # b_ih   (f32)
            const((1, 3 * d)),                                          # b_hh   (f32)
            const((d, seg_len)),                                        # w_pred (bf16)
            const((1, seg_len)),                                        # b_pred (f32)
        ],
        out_specs=pl.BlockSpec((1, nt, pred_len), lambda b, j: (b, j, 0)),
        scratch_shapes=[pltpu.VMEM((sx, nt, 3 * d), jnp.float32)],
        compiler_params=pltpu.CompilerParams(
            dimension_semantics=("parallel", "parallel")),
    )(xw_p, pos_p,
      bf(params['w_emb']), params['b_emb'],
      bf(params['w_ih']), bf(params['w_hh']), params['b_ih'], params['b_hh'],
      bf(params['w_pred']), params['b_pred'])

    y = y_pad[:, :N, :].transpose(0, 2, 1) + seq_last        # [B, pred_len, N]
    return y[..., None]                                      # [B, pred_len, N, 1]


# ----------------------------------------------------------------------------------
# Pure-JAX reference (same math incl. bf16 matmul operands), for correctness check.
# ----------------------------------------------------------------------------------
def segrnn_reference(history_data, params, *, seq_len, pred_len, seg_len, d_model,
                     enc_in):
    del seq_len, enc_in
    xw, pos3, seq_last = _prepare(history_data, params, seg_len, pred_len, d_model)
    B, N, L = xw.shape
    d = d_model
    sx = L // seg_len
    sy = pred_len // seg_len
    bf = lambda a: a.astype(jnp.bfloat16)
    w_emb, w_ih, w_hh, w_pred = (bf(params[k]) for k in
                                 ('w_emb', 'w_ih', 'w_hh', 'w_pred'))
    b_emb, b_ih, b_hh, b_pred = (params[k] for k in
                                 ('b_emb', 'b_ih', 'b_hh', 'b_pred'))

    x = xw.reshape(B * N, L)
    h = jnp.zeros((B * N, d), jnp.float32)
    for t in range(sx):
        xt = bf(x[:, t * seg_len:(t + 1) * seg_len])
        e = jnp.maximum(
            jnp.dot(xt, w_emb, preferred_element_type=jnp.float32) + b_emb, 0.0)
        gx = jnp.dot(bf(e), w_ih, preferred_element_type=jnp.float32) + b_ih
        gh = jnp.dot(bf(h), w_hh, preferred_element_type=jnp.float32) + b_hh
        h = _gru_gates(gx, gh, h, d)

    pos = jnp.tile(pos3[None], (B, 1, 1, 1)).reshape(B * N, sy, d)
    gh = jnp.dot(bf(h), w_hh, preferred_element_type=jnp.float32) + b_hh
    ys = []
    for s in range(sy):
        gx = jnp.dot(bf(pos[:, s, :]), w_ih, preferred_element_type=jnp.float32) + b_ih
        hy = _gru_gates(gx, gh, h, d)
        ys.append(jnp.dot(bf(hy), w_pred, preferred_element_type=jnp.float32) + b_pred)
    y = jnp.concatenate(ys, axis=1).reshape(B, N, pred_len)
    y = y.transpose(0, 2, 1) + seq_last
    return y[..., None]


# ----------------------------------------------------------------------------------
if __name__ == "__main__":
    # small shapes consistent with the module
    B, seq_len, pred_len, seg_len, d_model, enc_in, C = 2, 16, 16, 4, 32, 4, 2
    key = jax.random.PRNGKey(0)
    k_data, k_param = jax.random.split(key)
    history_data = jax.random.normal(k_data, (B, seq_len, enc_in, C), jnp.float32)
    params = init_params(k_param, seq_len, pred_len, seg_len, d_model, enc_in)

    cfg = dict(seq_len=seq_len, pred_len=pred_len, seg_len=seg_len,
               d_model=d_model, enc_in=enc_in)

    out = segrnn_forward(history_data, params, **cfg)
    out = jax.block_until_ready(out)

    assert out.shape == (B, pred_len, enc_in, 1), out.shape
    ref = segrnn_reference(history_data, params, **cfg)
    # both paths use bf16 matmul operands + f32 accumulation; tolerance covers
    # MXU vs XLA accumulation-order differences
    np.testing.assert_allclose(np.asarray(out), np.asarray(ref), rtol=1e-2, atol=1e-2)

    print("KERNEL_OK")
</pallas_src>

<mosaic_0001>
module attributes {stable_mosaic.version = 11 : i64} {
  func.func @segrnn_fused_kernel(%arg0: i32, %arg1: i32, %arg2: memref<1x8x16xf32, #tpu.memory_space<vmem>>, %arg3: memref<8x128xf32, #tpu.memory_space<vmem>>, %arg4: memref<4x32xbf16, #tpu.memory_space<vmem>>, %arg5: memref<1x32xf32, #tpu.memory_space<vmem>>, %arg6: memref<32x96xbf16, #tpu.memory_space<vmem>>, %arg7: memref<32x96xbf16, #tpu.memory_space<vmem>>, %arg8: memref<1x96xf32, #tpu.memory_space<vmem>>, %arg9: memref<1x96xf32, #tpu.memory_space<vmem>>, %arg10: memref<32x4xbf16, #tpu.memory_space<vmem>>, %arg11: memref<1x4xf32, #tpu.memory_space<vmem>>, %arg12: memref<1x8x16xf32, #tpu.memory_space<vmem>>, %arg13: memref<4x8x96xf32, #tpu.memory_space<vmem>>) attributes {dimension_semantics = [#tpu.dimension_semantics<parallel>, #tpu.dimension_semantics<parallel>], iteration_bounds = array<i64: 2, 1>, scalar_prefetch = 0 : i64, scratch_operands = 1 : i64, tpu.core_type = #tpu.core_type<tc>, window_params = [{transform_indices = @transform_0, window_bounds = array<i64: 1, 8, 16>}, {transform_indices = @transform_1, window_bounds = array<i64: 8, 128>}, {pipeline_mode = #tpu.pipeline_mode<synchronous>, transform_indices = @transform_2, window_bounds = array<i64: 4, 32>}, {pipeline_mode = #tpu.pipeline_mode<synchronous>, transform_indices = @transform_3, window_bounds = array<i64: 1, 32>}, {pipeline_mode = #tpu.pipeline_mode<synchronous>, transform_indices = @transform_4, window_bounds = array<i64: 32, 96>}, {pipeline_mode = #tpu.pipeline_mode<synchronous>, transform_indices = @transform_5, window_bounds = array<i64: 32, 96>}, {pipeline_mode = #tpu.pipeline_mode<synchronous>, transform_indices = @transform_6, window_bounds = array<i64: 1, 96>}, {pipeline_mode = #tpu.pipeline_mode<synchronous>, transform_indices = @transform_7, window_bounds = array<i64: 1, 96>}, {pipeline_mode = #tpu.pipeline_mode<synchronous>, transform_indices = @transform_8, window_bounds = array<i64: 32, 4>}, {pipeline_mode = #tpu.pipeline_mode<synchronous>, transform_indices = @transform_9, window_bounds = array<i64: 1, 4>}, {transform_indices = @transform_10, window_bounds = array<i64: 1, 8, 16>}]} {
    %c0 = arith.constant 0 : index
    %c0_0 = arith.constant 0 : index
    %0 = vector.load %arg4[%c0, %c0_0] : memref<4x32xbf16, #tpu.memory_space<vmem>>, vector<4x32xbf16>
    %c0_1 = arith.constant 0 : index
    %c0_2 = arith.constant 0 : index
    %1 = vector.load %arg5[%c0_1, %c0_2] : memref<1x32xf32, #tpu.memory_space<vmem>>, vector<1x32xf32>
    %c0_3 = arith.constant 0 : index
    %c0_4 = arith.constant 0 : index
    %2 = vector.load %arg6[%c0_3, %c0_4] : memref<32x96xbf16, #tpu.memory_space<vmem>>, vector<32x96xbf16>
    %c0_5 = arith.constant 0 : index
    %c0_6 = arith.constant 0 : index
    %3 = vector.load %arg7[%c0_5, %c0_6] : memref<32x96xbf16, #tpu.memory_space<vmem>>, vector<32x96xbf16>
    %c0_7 = arith.constant 0 : index
    %c0_8 = arith.constant 0 : index
    %4 = vector.load %arg8[%c0_7, %c0_8] : memref<1x96xf32, #tpu.memory_space<vmem>>, vector<1x96xf32>
    %c0_9 = arith.constant 0 : index
    %c0_10 = arith.constant 0 : index
    %5 = vector.load %arg9[%c0_9, %c0_10] : memref<1x96xf32, #tpu.memory_space<vmem>>, vector<1x96xf32>
    %c0_11 = arith.constant 0 : index
    %c0_12 = arith.constant 0 : index
    %c0_13 = arith.constant 0 : index
    %6 = vector.load %arg2[%c0_11, %c0_12, %c0_13] : memref<1x8x16xf32, #tpu.memory_space<vmem>>, vector<1x8x16xf32>
    %7 = vector.shape_cast %6 : vector<1x8x16xf32> to vector<8x16xf32>
    %8 = vector.extract_strided_slice %7 {offsets = [0, 0], sizes = [8, 4], strides = [1, 1]} : vector<8x16xf32> to vector<8x4xf32>
    %9 = arith.truncf %8 : vector<8x4xf32> to vector<8x4xbf16>
    %cst = arith.constant dense<0.000000e+00> : vector<8x32xf32>
    %10 = tpu.matmul %9, %0, %cst {dimension_numbers = #tpu.dot_dimension_numbers<[1], [0], [0], [1], [0, 0, 1, 1], [], []>} : vector<8x4xbf16>, vector<4x32xbf16>, vector<8x32xf32> -> vector<8x32xf32>
    %11 = vector.broadcast %1 : vector<1x32xf32> to vector<8x32xf32>
    %12 = arith.addf %10, %11 : vector<8x32xf32>
    %cst_14 = arith.constant 0.000000e+00 : f32
    %13 = vector.broadcast %cst_14 : f32 to vector<8x32xf32>
    %14 = arith.maximumf %12, %13 : vector<8x32xf32>
    %15 = arith.truncf %14 : vector<8x32xf32> to vector<8x32xbf16>
    %cst_15 = arith.constant dense<0.000000e+00> : vector<8x96xf32>
    %16 = tpu.matmul %15, %2, %cst_15 {dimension_numbers = #tpu.dot_dimension_numbers<[1], [0], [0], [1], [0, 0, 1, 1], [], []>} : vector<8x32xbf16>, vector<32x96xbf16>, vector<8x96xf32> -> vector<8x96xf32>
    %17 = vector.broadcast %4 : vector<1x96xf32> to vector<8x96xf32>
    %18 = arith.addf %16, %17 : vector<8x96xf32>
    %c0_16 = arith.constant 0 : index
    %c0_17 = arith.constant 0 : index
    %c0_18 = arith.constant 0 : index
    %19 = vector.load %arg13[%c0_16, %c0_17, %c0_18] : memref<4x8x96xf32, #tpu.memory_space<vmem>>, vector<1x8x96xf32>
    %20 = vector.shape_cast %19 : vector<1x8x96xf32> to vector<8x96xf32>
    %21 = vector.shape_cast %18 : vector<8x96xf32> to vector<1x8x96xf32>
    tpu.vector_store %arg13[%c0_16, %c0_17, %c0_18], %21 {strides = array<i32>} : memref<4x8x96xf32, #tpu.memory_space<vmem>>, vector<1x8x96xf32>,
    %22 = vector.extract_strided_slice %7 {offsets = [0, 4], sizes = [8, 4], strides = [1, 1]} : vector<8x16xf32> to vector<8x4xf32>
    %23 = arith.truncf %22 : vector<8x4xf32> to vector<8x4xbf16>
    %cst_19 = arith.constant dense<0.000000e+00> : vector<8x32xf32>
    %24 = tpu.matmul %23, %0, %cst_19 {dimension_numbers = #tpu.dot_dimension_numbers<[1], [0], [0], [1], [0, 0, 1, 1], [], []>} : vector<8x4xbf16>, vector<4x32xbf16>, vector<8x32xf32> -> vector<8x32xf32>
    %25 = vector.broadcast %1 : vector<1x32xf32> to vector<8x32xf32>
    %26 = arith.addf %24, %25 : vector<8x32xf32>
    %cst_20 = arith.constant 0.000000e+00 : f32
    %27 = vector.broadcast %cst_20 : f32 to vector<8x32xf32>
    %28 = arith.maximumf %26, %27 : vector<8x32xf32>
    %29 = arith.truncf %28 : vector<8x32xf32> to vector<8x32xbf16>
    %cst_21 = arith.constant dense<0.000000e+00> : vector<8x96xf32>
    %30 = tpu.matmul %29, %2, %cst_21 {dimension_numbers = #tpu.dot_dimension_numbers<[1], [0], [0], [1], [0, 0, 1, 1], [], []>} : vector<8x32xbf16>, vector<32x96xbf16>, vector<8x96xf32> -> vector<8x96xf32>
    %31 = vector.broadcast %4 : vector<1x96xf32> to vector<8x96xf32>
    %32 = arith.addf %30, %31 : vector<8x96xf32>
    %c1 = arith.constant 1 : index
    %c0_22 = arith.constant 0 : index
    %c0_23 = arith.constant 0 : index
    %33 = vector.load %arg13[%c1, %c0_22, %c0_23] : memref<4x8x96xf32, #tpu.memory_space<vmem>>, vector<1x8x96xf32>
    %34 = vector.shape_cast %33 : vector<1x8x96xf32> to vector<8x96xf32>
    %35 = vector.shape_cast %32 : vector<8x96xf32> to vector<1x8x96xf32>
    tpu.vector_store %arg13[%c1, %c0_22, %c0_23], %35 {strides = array<i32>} : memref<4x8x96xf32, #tpu.memory_space<vmem>>, vector<1x8x96xf32>,
    %36 = vector.extract_strided_slice %7 {offsets = [0, 8], sizes = [8, 4], strides = [1, 1]} : vector<8x16xf32> to vector<8x4xf32>
    %37 = arith.truncf %36 : vector<8x4xf32> to vector<8x4xbf16>
    %cst_24 = arith.constant dense<0.000000e+00> : vector<8x32xf32>
    %38 = tpu.matmul %37, %0, %cst_24 {dimension_numbers = #tpu.dot_dimension_numbers<[1], [0], [0], [1], [0, 0, 1, 1], [], []>} : vector<8x4xbf16>, vector<4x32xbf16>, vector<8x32xf32> -> vector<8x32xf32>
    %39 = vector.broadcast %1 : vector<1x32xf32> to vector<8x32xf32>
    %40 = arith.addf %38, %39 : vector<8x32xf32>
    %cst_25 = arith.constant 0.000000e+00 : f32
    %41 = vector.broadcast %cst_25 : f32 to vector<8x32xf32>
    %42 = arith.maximumf %40, %41 : vector<8x32xf32>
    %43 = arith.truncf %42 : vector<8x32xf32> to vector<8x32xbf16>
    %cst_26 = arith.constant dense<0.000000e+00> : vector<8x96xf32>
    %44 = tpu.matmul %43, %2, %cst_26 {dimension_numbers = #tpu.dot_dimension_numbers<[1], [0], [0], [1], [0, 0, 1, 1], [], []>} : vector<8x32xbf16>, vector<32x96xbf16>, vector<8x96xf32> -> vector<8x96xf32>
    %45 = vector.broadcast %4 : vector<1x96xf32> to vector<8x96xf32>
    %46 = arith.addf %44, %45 : vector<8x96xf32>
    %c2 = arith.constant 2 : index
    %c0_27 = arith.constant 0 : index
    %c0_28 = arith.constant 0 : index
    %47 = vector.load %arg13[%c2, %c0_27, %c0_28] : memref<4x8x96xf32, #tpu.memory_space<vmem>>, vector<1x8x96xf32>
    %48 = vector.shape_cast %47 : vector<1x8x96xf32> to vector<8x96xf32>
    %49 = vector.shape_cast %46 : vector<8x96xf32> to vector<1x8x96xf32>
    tpu.vector_store %arg13[%c2, %c0_27, %c0_28], %49 {strides = array<i32>} : memref<4x8x96xf32, #tpu.memory_space<vmem>>, vector<1x8x96xf32>,
    %50 = vector.extract_strided_slice %7 {offsets = [0, 12], sizes = [8, 4], strides = [1, 1]} : vector<8x16xf32> to vector<8x4xf32>
    %51 = arith.truncf %50 : vector<8x4xf32> to vector<8x4xbf16>
    %cst_29 = arith.constant dense<0.000000e+00> : vector<8x32xf32>
    %52 = tpu.matmul %51, %0, %cst_29 {dimension_numbers = #tpu.dot_dimension_numbers<[1], [0], [0], [1], [0, 0, 1, 1], [], []>} : vector<8x4xbf16>, vector<4x32xbf16>, vector<8x32xf32> -> vector<8x32xf32>
    %53 = vector.broadcast %1 : vector<1x32xf32> to vector<8x32xf32>
    %54 = arith.addf %52, %53 : vector<8x32xf32>
    %cst_30 = arith.constant 0.000000e+00 : f32
    %55 = vector.broadcast %cst_30 : f32 to vector<8x32xf32>
    %56 = arith.maximumf %54, %55 : vector<8x32xf32>
    %57 = arith.truncf %56 : vector<8x32xf32> to vector<8x32xbf16>
    %cst_31 = arith.constant dense<0.000000e+00> : vector<8x96xf32>
    %58 = tpu.matmul %57, %2, %cst_31 {dimension_numbers = #tpu.dot_dimension_numbers<[1], [0], [0], [1], [0, 0, 1, 1], [], []>} : vector<8x32xbf16>, vector<32x96xbf16>, vector<8x96xf32> -> vector<8x96xf32>
    %59 = vector.broadcast %4 : vector<1x96xf32> to vector<8x96xf32>
    %60 = arith.addf %58, %59 : vector<8x96xf32>
    %c3 = arith.constant 3 : index
    %c0_32 = arith.constant 0 : index
    %c0_33 = arith.constant 0 : index
    %61 = vector.load %arg13[%c3, %c0_32, %c0_33] : memref<4x8x96xf32, #tpu.memory_space<vmem>>, vector<1x8x96xf32>
    %62 = vector.shape_cast %61 : vector<1x8x96xf32> to vector<8x96xf32>
    %63 = vector.shape_cast %60 : vector<8x96xf32> to vector<1x8x96xf32>
    tpu.vector_store %arg13[%c3, %c0_32, %c0_33], %63 {strides = array<i32>} : memref<4x8x96xf32, #tpu.memory_space<vmem>>, vector<1x8x96xf32>,
    %cst_34 = arith.constant 0.000000e+00 : f32
    %64 = vector.broadcast %cst_34 : f32 to vector<8x32xf32>
    %c0_i32 = arith.constant 0 : i32
    %65 = arith.truncf %64 : vector<8x32xf32> to vector<8x32xbf16>
    %cst_35 = arith.constant dense<0.000000e+00> : vector<8x96xf32>
    %66 = tpu.matmul %65, %3, %cst_35 {dimension_numbers = #tpu.dot_dimension_numbers<[1], [0], [0], [1], [0, 0, 1, 1], [], []>} : vector<8x32xbf16>, vector<32x96xbf16>, vector<8x96xf32> -> vector<8x96xf32>
    %67 = vector.broadcast %5 : vector<1x96xf32> to vector<8x96xf32>
    %68 = arith.addf %66, %67 : vector<8x96xf32>
    %69 = arith.index_cast %c0_i32 : i32 to index
    %c0_36 = arith.constant 0 : index
    %c0_37 = arith.constant 0 : index
    %70 = vector.load %arg13[%69, %c0_36, %c0_37] : memref<4x8x96xf32, #tpu.memory_space<vmem>>, vector<1x8x96xf32>
    %71 = vector.shape_cast %70 : vector<1x8x96xf32> to vector<8x96xf32>
    %72 = vector.extract_strided_slice %71 {offsets = [0, 0], sizes = [8, 32], strides = [1, 1]} : vector<8x96xf32> to vector<8x32xf32>
    %73 = vector.extract_strided_slice %68 {offsets = [0, 0], sizes = [8, 32], strides = [1, 1]} : vector<8x96xf32> to vector<8x32xf32>
    %74 = arith.addf %72, %73 : vector<8x32xf32>
    %75 = arith.negf %74 : vector<8x32xf32>
    %76 = math.exp %75 : vector<8x32xf32>
    %cst_38 = arith.constant 1.000000e+00 : f32
    %77 = vector.broadcast %cst_38 : f32 to vector<8x32xf32>
    %78 = arith.addf %77, %76 : vector<8x32xf32>
    %79 = arith.divf %77, %78 : vector<8x32xf32>
    %80 = vector.extract_strided_slice %71 {offsets = [0, 32], sizes = [8, 32], strides = [1, 1]} : vector<8x96xf32> to vector<8x32xf32>
    %81 = vector.extract_strided_slice %68 {offsets = [0, 32], sizes = [8, 32], strides = [1, 1]} : vector<8x96xf32> to vector<8x32xf32>
    %82 = arith.addf %80, %81 : vector<8x32xf32>
    %83 = arith.negf %82 : vector<8x32xf32>
    %84 = math.exp %83 : vector<8x32xf32>
    %cst_39 = arith.constant 1.000000e+00 : f32
    %85 = vector.broadcast %cst_39 : f32 to vector<8x32xf32>
    %86 = arith.addf %85, %84 : vector<8x32xf32>
    %87 = arith.divf %85, %86 : vector<8x32xf32>
    %88 = vector.extract_strided_slice %71 {offsets = [0, 64], sizes = [8, 32], strides = [1, 1]} : vector<8x96xf32> to vector<8x32xf32>
    %89 = vector.extract_strided_slice %68 {offsets = [0, 64], sizes = [8, 32], strides = [1, 1]} : vector<8x96xf32> to vector<8x32xf32>
    %90 = arith.mulf %79, %89 : vector<8x32xf32>
    %91 = arith.addf %88, %90 : vector<8x32xf32>
    %92 = math.tanh %91 : vector<8x32xf32>
    %cst_40 = arith.constant 1.000000e+00 : f32
    %93 = vector.broadcast %cst_40 : f32 to vector<8x32xf32>
    %94 = arith.subf %93, %87 : vector<8x32xf32>
    %95 = arith.mulf %94, %92 : vector<8x32xf32>
    %96 = arith.mulf %87, %64 : vector<8x32xf32>
    %97 = arith.addf %95, %96 : vector<8x32xf32>
    %c1_i32 = arith.constant 1 : i32
    %98 = arith.truncf %97 : vector<8x32xf32> to vector<8x32xbf16>
    %cst_41 = arith.constant dense<0.000000e+00> : vector<8x96xf32>
    %99 = tpu.matmul %98, %3, %cst_41 {dimension_numbers = #tpu.dot_dimension_numbers<[1], [0], [0], [1], [0, 0, 1, 1], [], []>} : vector<8x32xbf16>, vector<32x96xbf16>, vector<8x96xf32> -> vector<8x96xf32>
    %100 = vector.broadcast %5 : vector<1x96xf32> to vector<8x96xf32>
    %101 = arith.addf %99, %100 : vector<8x96xf32>
    %102 = arith.index_cast %c1_i32 : i32 to index
    %c0_42 = arith.constant 0 : index
    %c0_43 = arith.constant 0 : index
    %103 = vector.load %arg13[%102, %c0_42, %c0_43] : memref<4x8x96xf32, #tpu.memory_space<vmem>>, vector<1x8x96xf32>
    %104 = vector.shape_cast %103 : vector<1x8x96xf32> to vector<8x96xf32>
    %105 = vector.extract_strided_slice %104 {offsets = [0, 0], sizes = [8, 32], strides = [1, 1]} : vector<8x96xf32> to vector<8x32xf32>
    %106 = vector.extract_strided_slice %101 {offsets = [0, 0], sizes = [8, 32], strides = [1, 1]} : vector<8x96xf32> to vector<8x32xf32>
    %107 = arith.addf %105, %106 : vector<8x32xf32>
    %108 = arith.negf %107 : vector<8x32xf32>
    %109 = math.exp %108 : vector<8x32xf32>
    %cst_44 = arith.constant 1.000000e+00 : f32
    %110 = vector.broadcast %cst_44 : f32 to vector<8x32xf32>
    %111 = arith.addf %110, %109 : vector<8x32xf32>
    %112 = arith.divf %110, %111 : vector<8x32xf32>
    %113 = vector.extract_strided_slice %104 {offsets = [0, 32], sizes = [8, 32], strides = [1, 1]} : vector<8x96xf32> to vector<8x32xf32>
    %114 = vector.extract_strided_slice %101 {offsets = [0, 32], sizes = [8, 32], strides = [1, 1]} : vector<8x96xf32> to vector<8x32xf32>
    %115 = arith.addf %113, %114 : vector<8x32xf32>
    %116 = arith.negf %115 : vector<8x32xf32>
    %117 = math.exp %116 : vector<8x32xf32>
    %cst_45 = arith.constant 1.000000e+00 : f32
    %118 = vector.broadcast %cst_45 : f32 to vector<8x32xf32>
    %119 = arith.addf %118, %117 : vector<8x32xf32>
    %120 = arith.divf %118, %119 : vector<8x32xf32>
    %121 = vector.extract_strided_slice %104 {offsets = [0, 64], sizes = [8, 32], strides = [1, 1]} : vector<8x96xf32> to vector<8x32xf32>
    %122 = vector.extract_strided_slice %101 {offsets = [0, 64], sizes = [8, 32], strides = [1, 1]} : vector<8x96xf32> to vector<8x32xf32>
    %123 = arith.mulf %112, %122 : vector<8x32xf32>
    %124 = arith.addf %121, %123 : vector<8x32xf32>
    %125 = math.tanh %124 : vector<8x32xf32>
    %cst_46 = arith.constant 1.000000e+00 : f32
    %126 = vector.broadcast %cst_46 : f32 to vector<8x32xf32>
    %127 = arith.subf %126, %120 : vector<8x32xf32>
    %128 = arith.mulf %127, %125 : vector<8x32xf32>
    %129 = arith.mulf %120, %97 : vector<8x32xf32>
    %130 = arith.addf %128, %129 : vector<8x32xf32>
    %c2_i32 = arith.constant 2 : i32
    %131 = arith.truncf %130 : vector<8x32xf32> to vector<8x32xbf16>
    %cst_47 = arith.constant dense<0.000000e+00> : vector<8x96xf32>
    %132 = tpu.matmul %131, %3, %cst_47 {dimension_numbers = #tpu.dot_dimension_numbers<[1], [0], [0], [1], [0, 0, 1, 1], [], []>} : vector<8x32xbf16>, vector<32x96xbf16>, vector<8x96xf32> -> vector<8x96xf32>
    %133 = vector.broadcast %5 : vector<1x96xf32> to vector<8x96xf32>
    %134 = arith.addf %132, %133 : vector<8x96xf32>
    %135 = arith.index_cast %c2_i32 : i32 to index
    %c0_48 = arith.constant 0 : index
    %c0_49 = arith.constant 0 : index
    %136 = vector.load %arg13[%135, %c0_48, %c0_49] : memref<4x8x96xf32, #tpu.memory_space<vmem>>, vector<1x8x96xf32>
    %137 = vector.shape_cast %136 : vector<1x8x96xf32> to vector<8x96xf32>
    %138 = vector.extract_strided_slice %137 {offsets = [0, 0], sizes = [8, 32], strides = [1, 1]} : vector<8x96xf32> to vector<8x32xf32>
    %139 = vector.extract_strided_slice %134 {offsets = [0, 0], sizes = [8, 32], strides = [1, 1]} : vector<8x96xf32> to vector<8x32xf32>
    %140 = arith.addf %138, %139 : vector<8x32xf32>
    %141 = arith.negf %140 : vector<8x32xf32>
    %142 = math.exp %141 : vector<8x32xf32>
    %cst_50 = arith.constant 1.000000e+00 : f32
    %143 = vector.broadcast %cst_50 : f32 to vector<8x32xf32>
    %144 = arith.addf %143, %142 : vector<8x32xf32>
    %145 = arith.divf %143, %144 : vector<8x32xf32>
    %146 = vector.extract_strided_slice %137 {offsets = [0, 32], sizes = [8, 32], strides = [1, 1]} : vector<8x96xf32> to vector<8x32xf32>
    %147 = vector.extract_strided_slice %134 {offsets = [0, 32], sizes = [8, 32], strides = [1, 1]} : vector<8x96xf32> to vector<8x32xf32>
    %148 = arith.addf %146, %147 : vector<8x32xf32>
    %149 = arith.negf %148 : vector<8x32xf32>
    %150 = math.exp %149 : vector<8x32xf32>
    %cst_51 = arith.constant 1.000000e+00 : f32
    %151 = vector.broadcast %cst_51 : f32 to vector<8x32xf32>
    %152 = arith.addf %151, %150 : vector<8x32xf32>
    %153 = arith.divf %151, %152 : vector<8x32xf32>
    %154 = vector.extract_strided_slice %137 {offsets = [0, 64], sizes = [8, 32], strides = [1, 1]} : vector<8x96xf32> to vector<8x32xf32>
    %155 = vector.extract_strided_slice %134 {offsets = [0, 64], sizes = [8, 32], strides = [1, 1]} : vector<8x96xf32> to vector<8x32xf32>
    %156 = arith.mulf %145, %155 : vector<8x32xf32>
    %157 = arith.addf %154, %156 : vector<8x32xf32>
    %158 = math.tanh %157 : vector<8x32xf32>
    %cst_52 = arith.constant 1.000000e+00 : f32
    %159 = vector.broadcast %cst_52 : f32 to vector<8x32xf32>
    %160 = arith.subf %159, %153 : vector<8x32xf32>
    %161 = arith.mulf %160, %158 : vector<8x32xf32>
    %162 = arith.mulf %153, %130 : vector<8x32xf32>
    %163 = arith.addf %161, %162 : vector<8x32xf32>
    %c3_i32 = arith.constant 3 : i32
    %164 = arith.truncf %163 : vector<8x32xf32> to vector<8x32xbf16>
    %cst_53 = arith.constant dense<0.000000e+00> : vector<8x96xf32>
    %165 = tpu.matmul %164, %3, %cst_53 {dimension_numbers = #tpu.dot_dimension_numbers<[1], [0], [0], [1], [0, 0, 1, 1], [], []>} : vector<8x32xbf16>, vector<32x96xbf16>, vector<8x96xf32> -> vector<8x96xf32>
    %166 = vector.broadcast %5 : vector<1x96xf32> to vector<8x96xf32>
    %167 = arith.addf %165, %166 : vector<8x96xf32>
    %168 = arith.index_cast %c3_i32 : i32 to index
    %c0_54 = arith.constant 0 : index
    %c0_55 = arith.constant 0 : index
    %169 = vector.load %arg13[%168, %c0_54, %c0_55] : memref<4x8x96xf32, #tpu.memory_space<vmem>>, vector<1x8x96xf32>
    %170 = vector.shape_cast %169 : vector<1x8x96xf32> to vector<8x96xf32>
    %171 = vector.extract_strided_slice %170 {offsets = [0, 0], sizes = [8, 32], strides = [1, 1]} : vector<8x96xf32> to vector<8x32xf32>
    %172 = vector.extract_strided_slice %167 {offsets = [0, 0], sizes = [8, 32], strides = [1, 1]} : vector<8x96xf32> to vector<8x32xf32>
    %173 = arith.addf %171, %172 : vector<8x32xf32>
    %174 = arith.negf %173 : vector<8x32xf32>
    %175 = math.exp %174 : vector<8x32xf32>
    %cst_56 = arith.constant 1.000000e+00 : f32
    %176 = vector.broadcast %cst_56 : f32 to vector<8x32xf32>
    %177 = arith.addf %176, %175 : vector<8x32xf32>
    %178 = arith.divf %176, %177 : vector<8x32xf32>
    %179 = vector.extract_strided_slice %170 {offsets = [0, 32], sizes = [8, 32], strides = [1, 1]} : vector<8x96xf32> to vector<8x32xf32>
    %180 = vector.extract_strided_slice %167 {offsets = [0, 32], sizes = [8, 32], strides = [1, 1]} : vector<8x96xf32> to vector<8x32xf32>
    %181 = arith.addf %179, %180 : vector<8x32xf32>
    %182 = arith.negf %181 : vector<8x32xf32>
    %183 = math.exp %182 : vector<8x32xf32>
    %cst_57 = arith.constant 1.000000e+00 : f32
    %184 = vector.broadcast %cst_57 : f32 to vector<8x32xf32>
    %185 = arith.addf %184, %183 : vector<8x32xf32>
    %186 = arith.divf %184, %185 : vector<8x32xf32>
    %187 = vector.extract_strided_slice %170 {offsets = [0, 64], sizes = [8, 32], strides = [1, 1]} : vector<8x96xf32> to vector<8x32xf32>
    %188 = vector.extract_strided_slice %167 {offsets = [0, 64], sizes = [8, 32], strides = [1, 1]} : vector<8x96xf32> to vector<8x32xf32>
    %189 = arith.mulf %178, %188 : vector<8x32xf32>
    %190 = arith.addf %187, %189 : vector<8x32xf32>
    %191 = math.tanh %190 : vector<8x32xf32>
    %cst_58 = arith.constant 1.000000e+00 : f32
    %192 = vector.broadcast %cst_58 : f32 to vector<8x32xf32>
    %193 = arith.subf %192, %186 : vector<8x32xf32>
    %194 = arith.mulf %193, %191 : vector<8x32xf32>
    %195 = arith.mulf %186, %163 : vector<8x32xf32>
    %196 = arith.addf %194, %195 : vector<8x32xf32>
    %c4_i32 = arith.constant 4 : i32
    %c0_59 = arith.constant 0 : index
    %c0_60 = arith.constant 0 : index
    %197 = vector.load %arg3[%c0_59, %c0_60] : memref<8x128xf32, #tpu.memory_space<vmem>>, vector<8x128xf32>
    %c0_61 = arith.constant 0 : index
    %c0_62 = arith.constant 0 : index
    %198 = vector.load %arg10[%c0_61, %c0_62] : memref<32x4xbf16, #tpu.memory_space<vmem>>, vector<32x4xbf16>
    %c0_63 = arith.constant 0 : index
    %c0_64 = arith.constant 0 : index
    %199 = vector.load %arg11[%c0_63, %c0_64] : memref<1x4xf32, #tpu.memory_space<vmem>>, vector<1x4xf32>
    %200 = arith.truncf %196 : vector<8x32xf32> to vector<8x32xbf16>
    %cst_65 = arith.constant dense<0.000000e+00> : vector<8x96xf32>
    %201 = tpu.matmul %200, %3, %cst_65 {dimension_numbers = #tpu.dot_dimension_numbers<[1], [0], [0], [1], [0, 0, 1, 1], [], []>} : vector<8x32xbf16>, vector<32x96xbf16>, vector<8x96xf32> -> vector<8x96xf32>
    %202 = vector.broadcast %5 : vector<1x96xf32> to vector<8x96xf32>
    %203 = arith.addf %201, %202 : vector<8x96xf32>
    %204 = vector.extract_strided_slice %197 {offsets = [0, 0], sizes = [8, 32], strides = [1, 1]} : vector<8x128xf32> to vector<8x32xf32>
    %205 = arith.truncf %204 : vector<8x32xf32> to vector<8x32xbf16>
    %cst_66 = arith.constant dense<0.000000e+00> : vector<8x96xf32>
    %206 = tpu.matmul %205, %2, %cst_66 {dimension_numbers = #tpu.dot_dimension_numbers<[1], [0], [0], [1], [0, 0, 1, 1], [], []>} : vector<8x32xbf16>, vector<32x96xbf16>, vector<8x96xf32> -> vector<8x96xf32>
    %207 = vector.broadcast %4 : vector<1x96xf32> to vector<8x96xf32>
    %208 = arith.addf %206, %207 : vector<8x96xf32>
    %209 = vector.extract_strided_slice %208 {offsets = [0, 0], sizes = [8, 32], strides = [1, 1]} : vector<8x96xf32> to vector<8x32xf32>
    %210 = vector.extract_strided_slice %203 {offsets = [0, 0], sizes = [8, 32], strides = [1, 1]} : vector<8x96xf32> to vector<8x32xf32>
    %211 = arith.addf %209, %210 : vector<8x32xf32>
    %212 = arith.negf %211 : vector<8x32xf32>
    %213 = math.exp %212 : vector<8x32xf32>
    %cst_67 = arith.constant 1.000000e+00 : f32
    %214 = vector.broadcast %cst_67 : f32 to vector<8x32xf32>
    %215 = arith.addf %214, %213 : vector<8x32xf32>
    %216 = arith.divf %214, %215 : vector<8x32xf32>
    %217 = vector.extract_strided_slice %208 {offsets = [0, 32], sizes = [8, 32], strides = [1, 1]} : vector<8x96xf32> to vector<8x32xf32>
    %218 = vector.extract_strided_slice %203 {offsets = [0, 32], sizes = [8, 32], strides = [1, 1]} : vector<8x96xf32> to vector<8x32xf32>
    %219 = arith.addf %217, %218 : vector<8x32xf32>
    %220 = arith.negf %219 : vector<8x32xf32>
    %221 = math.exp %220 : vector<8x32xf32>
    %cst_68 = arith.constant 1.000000e+00 : f32
    %222 = vector.broadcast %cst_68 : f32 to vector<8x32xf32>
    %223 = arith.addf %222, %221 : vector<8x32xf32>
    %224 = arith.divf %222, %223 : vector<8x32xf32>
    %225 = vector.extract_strided_slice %208 {offsets = [0, 64], sizes = [8, 32], strides = [1, 1]} : vector<8x96xf32> to vector<8x32xf32>
    %226 = vector.extract_strided_slice %203 {offsets = [0, 64], sizes = [8, 32], strides = [1, 1]} : vector<8x96xf32> to vector<8x32xf32>
    %227 = arith.mulf %216, %226 : vector<8x32xf32>
    %228 = arith.addf %225, %227 : vector<8x32xf32>
    %229 = math.tanh %228 : vector<8x32xf32>
    %cst_69 = arith.constant 1.000000e+00 : f32
    %230 = vector.broadcast %cst_69 : f32 to vector<8x32xf32>
    %231 = arith.subf %230, %224 : vector<8x32xf32>
    %232 = arith.mulf %231, %229 : vector<8x32xf32>
    %233 = arith.mulf %224, %196 : vector<8x32xf32>
    %234 = arith.addf %232, %233 : vector<8x32xf32>
    %235 = arith.truncf %234 : vector<8x32xf32> to vector<8x32xbf16>
    %cst_70 = arith.constant dense<0.000000e+00> : vector<8x4xf32>
    %236 = tpu.matmul %235, %198, %cst_70 {dimension_numbers = #tpu.dot_dimension_numbers<[1], [0], [0], [1], [0, 0, 1, 1], [], []>} : vector<8x32xbf16>, vector<32x4xbf16>, vector<8x4xf32> -> vector<8x4xf32>
    %237 = vector.broadcast %199 : vector<1x4xf32> to vector<8x4xf32>
    %238 = arith.addf %236, %237 : vector<8x4xf32>
    %239 = vector.extract_strided_slice %197 {offsets = [0, 32], sizes = [8, 32], strides = [1, 1]} : vector<8x128xf32> to vector<8x32xf32>
    %240 = arith.truncf %239 : vector<8x32xf32> to vector<8x32xbf16>
    %cst_71 = arith.constant dense<0.000000e+00> : vector<8x96xf32>
    %241 = tpu.matmul %240, %2, %cst_71 {dimension_numbers = #tpu.dot_dimension_numbers<[1], [0], [0], [1], [0, 0, 1, 1], [], []>} : vector<8x32xbf16>, vector<32x96xbf16>, vector<8x96xf32> -> vector<8x96xf32>
    %242 = vector.broadcast %4 : vector<1x96xf32> to vector<8x96xf32>
    %243 = arith.addf %241, %242 : vector<8x96xf32>
    %244 = vector.extract_strided_slice %243 {offsets = [0, 0], sizes = [8, 32], strides = [1, 1]} : vector<8x96xf32> to vector<8x32xf32>
    %245 = vector.extract_strided_slice %203 {offsets = [0, 0], sizes = [8, 32], strides = [1, 1]} : vector<8x96xf32> to vector<8x32xf32>
    %246 = arith.addf %244, %245 : vector<8x32xf32>
    %247 = arith.negf %246 : vector<8x32xf32>
    %248 = math.exp %247 : vector<8x32xf32>
    %cst_72 = arith.constant 1.000000e+00 : f32
    %249 = vector.broadcast %cst_72 : f32 to vector<8x32xf32>
    %250 = arith.addf %249, %248 : vector<8x32xf32>
    %251 = arith.divf %249, %250 : vector<8x32xf32>
    %252 = vector.extract_strided_slice %243 {offsets = [0, 32], sizes = [8, 32], strides = [1, 1]} : vector<8x96xf32> to vector<8x32xf32>
    %253 = vector.extract_strided_slice %203 {offsets = [0, 32], sizes = [8, 32], strides = [1, 1]} : vector<8x96xf32> to vector<8x32xf32>
    %254 = arith.addf %252, %253 : vector<8x32xf32>
    %255 = arith.negf %254 : vector<8x32xf32>
    %256 = math.exp %255 : vector<8x32xf32>
    %cst_73 = arith.constant 1.000000e+00 : f32
    %257 = vector.broadcast %cst_73 : f32 to vector<8x32xf32>
    %258 = arith.addf %257, %256 : vector<8x32xf32>
    %259 = arith.divf %257, %258 : vector<8x32xf32>
    %260 = vector.extract_strided_slice %243 {offsets = [0, 64], sizes = [8, 32], strides = [1, 1]} : vector<8x96xf32> to vector<8x32xf32>
    %261 = vector.extract_strided_slice %203 {offsets = [0, 64], sizes = [8, 32], strides = [1, 1]} : vector<8x96xf32> to vector<8x32xf32>
    %262 = arith.mulf %251, %261 : vector<8x32xf32>
    %263 = arith.addf %260, %262 : vector<8x32xf32>
    %264 = math.tanh %263 : vector<8x32xf32>
    %cst_74 = arith.constant 1.000000e+00 : f32
    %265 = vector.broadcast %cst_74 : f32 to vector<8x32xf32>
    %266 = arith.subf %265, %259 : vector<8x32xf32>
    %267 = arith.mulf %266, %264 : vector<8x32xf32>
    %268 = arith.mulf %259, %196 : vector<8x32xf32>
    %269 = arith.addf %267, %268 : vector<8x32xf32>
    %270 = arith.truncf %269 : vector<8x32xf32> to vector<8x32xbf16>
    %cst_75 = arith.constant dense<0.000000e+00> : vector<8x4xf32>
    %271 = tpu.matmul %270, %198, %cst_75 {dimension_numbers = #tpu.dot_dimension_numbers<[1], [0], [0], [1], [0, 0, 1, 1], [], []>} : vector<8x32xbf16>, vector<32x4xbf16>, vector<8x4xf32> -> vector<8x4xf32>
    %272 = vector.broadcast %199 : vector<1x4xf32> to vector<8x4xf32>
    %273 = arith.addf %271, %272 : vector<8x4xf32>
    %274 = vector.extract_strided_slice %197 {offsets = [0, 64], sizes = [8, 32], strides = [1, 1]} : vector<8x128xf32> to vector<8x32xf32>
    %275 = arith.truncf %274 : vector<8x32xf32> to vector<8x32xbf16>
    %cst_76 = arith.constant dense<0.000000e+00> : vector<8x96xf32>
    %276 = tpu.matmul %275, %2, %cst_76 {dimension_numbers = #tpu.dot_dimension_numbers<[1], [0], [0], [1], [0, 0, 1, 1], [], []>} : vector<8x32xbf16>, vector<32x96xbf16>, vector<8x96xf32> -> vector<8x96xf32>
    %277 = vector.broadcast %4 : vector<1x96xf32> to vector<8x96xf32>
    %278 = arith.addf %276, %277 : vector<8x96xf32>
    %279 = vector.extract_strided_slice %278 {offsets = [0, 0], sizes = [8, 32], strides = [1, 1]} : vector<8x96xf32> to vector<8x32xf32>
    %280 = vector.extract_strided_slice %203 {offsets = [0, 0], sizes = [8, 32], strides = [1, 1]} : vector<8x96xf32> to vector<8x32xf32>
    %281 = arith.addf %279, %280 : vector<8x32xf32>
    %282 = arith.negf %281 : vector<8x32xf32>
    %283 = math.exp %282 : vector<8x32xf32>
    %cst_77 = arith.constant 1.000000e+00 : f32
    %284 = vector.broadcast %cst_77 : f32 to vector<8x32xf32>
    %285 = arith.addf %284, %283 : vector<8x32xf32>
    %286 = arith.divf %284, %285 : vector<8x32xf32>
    %287 = vector.extract_strided_slice %278 {offsets = [0, 32], sizes = [8, 32], strides = [1, 1]} : vector<8x96xf32> to vector<8x32xf32>
    %288 = vector.extract_strided_slice %203 {offsets = [0, 32], sizes = [8, 32], strides = [1, 1]} : vector<8x96xf32> to vector<8x32xf32>
    %289 = arith.addf %287, %288 : vector<8x32xf32>
    %290 = arith.negf %289 : vector<8x32xf32>
    %291 = math.exp %290 : vector<8x32xf32>
    %cst_78 = arith.constant 1.000000e+00 : f32
    %292 = vector.broadcast %cst_78 : f32 to vector<8x32xf32>
    %293 = arith.addf %292, %291 : vector<8x32xf32>
    %294 = arith.divf %292, %293 : vector<8x32xf32>
    %295 = vector.extract_strided_slice %278 {offsets = [0, 64], sizes = [8, 32], strides = [1, 1]} : vector<8x96xf32> to vector<8x32xf32>
    %296 = vector.extract_strided_slice %203 {offsets = [0, 64], sizes = [8, 32], strides = [1, 1]} : vector<8x96xf32> to vector<8x32xf32>
    %297 = arith.mulf %286, %296 : vector<8x32xf32>
    %298 = arith.addf %295, %297 : vector<8x32xf32>
    %299 = math.tanh %298 : vector<8x32xf32>
    %cst_79 = arith.constant 1.000000e+00 : f32
    %300 = vector.broadcast %cst_79 : f32 to vector<8x32xf32>
    %301 = arith.subf %300, %294 : vector<8x32xf32>
    %302 = arith.mulf %301, %299 : vector<8x32xf32>
    %303 = arith.mulf %294, %196 : vector<8x32xf32>
    %304 = arith.addf %302, %303 : vector<8x32xf32>
    %305 = arith.truncf %304 : vector<8x32xf32> to vector<8x32xbf16>
    %cst_80 = arith.constant dense<0.000000e+00> : vector<8x4xf32>
    %306 = tpu.matmul %305, %198, %cst_80 {dimension_numbers = #tpu.dot_dimension_numbers<[1], [0], [0], [1], [0, 0, 1, 1], [], []>} : vector<8x32xbf16>, vector<32x4xbf16>, vector<8x4xf32> -> vector<8x4xf32>
    %307 = vector.broadcast %199 : vector<1x4xf32> to vector<8x4xf32>
    %308 = arith.addf %306, %307 : vector<8x4xf32>
    %309 = vector.extract_strided_slice %197 {offsets = [0, 96], sizes = [8, 32], strides = [1, 1]} : vector<8x128xf32> to vector<8x32xf32>
    %310 = arith.truncf %309 : vector<8x32xf32> to vector<8x32xbf16>
    %cst_81 = arith.constant dense<0.000000e+00> : vector<8x96xf32>
    %311 = tpu.matmul %310, %2, %cst_81 {dimension_numbers = #tpu.dot_dimension_numbers<[1], [0], [0], [1], [0, 0, 1, 1], [], []>} : vector<8x32xbf16>, vector<32x96xbf16>, vector<8x96xf32> -> vector<8x96xf32>
    %312 = vector.broadcast %4 : vector<1x96xf32> to vector<8x96xf32>
    %313 = arith.addf %311, %312 : vector<8x96xf32>
    %314 = vector.extract_strided_slice %313 {offsets = [0, 0], sizes = [8, 32], strides = [1, 1]} : vector<8x96xf32> to vector<8x32xf32>
    %315 = vector.extract_strided_slice %203 {offsets = [0, 0], sizes = [8, 32], strides = [1, 1]} : vector<8x96xf32> to vector<8x32xf32>
    %316 = arith.addf %314, %315 : vector<8x32xf32>
    %317 = arith.negf %316 : vector<8x32xf32>
    %318 = math.exp %317 : vector<8x32xf32>
    %cst_82 = arith.constant 1.000000e+00 : f32
    %319 = vector.broadcast %cst_82 : f32 to vector<8x32xf32>
    %320 = arith.addf %319, %318 : vector<8x32xf32>
    %321 = arith.divf %319, %320 : vector<8x32xf32>
    %322 = vector.extract_strided_slice %313 {offsets = [0, 32], sizes = [8, 32], strides = [1, 1]} : vector<8x96xf32> to vector<8x32xf32>
    %323 = vector.extract_strided_slice %203 {offsets = [0, 32], sizes = [8, 32], strides = [1, 1]} : vector<8x96xf32> to vector<8x32xf32>
    %324 = arith.addf %322, %323 : vector<8x32xf32>
    %325 = arith.negf %324 : vector<8x32xf32>
    %326 = math.exp %325 : vector<8x32xf32>
    %cst_83 = arith.constant 1.000000e+00 : f32
    %327 = vector.broadcast %cst_83 : f32 to vector<8x32xf32>
    %328 = arith.addf %327, %326 : vector<8x32xf32>
    %329 = arith.divf %327, %328 : vector<8x32xf32>
    %330 = vector.extract_strided_slice %313 {offsets = [0, 64], sizes = [8, 32], strides = [1, 1]} : vector<8x96xf32> to vector<8x32xf32>
    %331 = vector.extract_strided_slice %203 {offsets = [0, 64], sizes = [8, 32], strides = [1, 1]} : vector<8x96xf32> to vector<8x32xf32>
    %332 = arith.mulf %321, %331 : vector<8x32xf32>
    %333 = arith.addf %330, %332 : vector<8x32xf32>
    %334 = math.tanh %333 : vector<8x32xf32>
    %cst_84 = arith.constant 1.000000e+00 : f32
    %335 = vector.broadcast %cst_84 : f32 to vector<8x32xf32>
    %336 = arith.subf %335, %329 : vector<8x32xf32>
    %337 = arith.mulf %336, %334 : vector<8x32xf32>
    %338 = arith.mulf %329, %196 : vector<8x32xf32>
    %339 = arith.addf %337, %338 : vector<8x32xf32>
    %340 = arith.truncf %339 : vector<8x32xf32> to vector<8x32xbf16>
    %cst_85 = arith.constant dense<0.000000e+00> : vector<8x4xf32>
    %341 = tpu.matmul %340, %198, %cst_85 {dimension_numbers = #tpu.dot_dimension_numbers<[1], [0], [0], [1], [0, 0, 1, 1], [], []>} : vector<8x32xbf16>, vector<32x4xbf16>, vector<8x4xf32> -> vector<8x4xf32>
    %342 = vector.broadcast %199 : vector<1x4xf32> to vector<8x4xf32>
    %343 = arith.addf %341, %342 : vector<8x4xf32>
    %344 = tpu.concatenate %238, %273, %308, %343 in 1 : vector<8x4xf32>, vector<8x4xf32>, vector<8x4xf32>, vector<8x4xf32> -> vector<8x16xf32>
    %c0_86 = arith.constant 0 : index
    %c0_87 = arith.constant 0 : index
    %c0_88 = arith.constant 0 : index
    %345 = vector.load %arg12[%c0_86, %c0_87, %c0_88] : memref<1x8x16xf32, #tpu.memory_space<vmem>>, vector<1x8x16xf32>
    %346 = vector.shape_cast %345 : vector<1x8x16xf32> to vector<8x16xf32>
    %347 = vector.shape_cast %344 : vector<8x16xf32> to vector<1x8x16xf32>
    tpu.vector_store %arg12[%c0_86, %c0_87, %c0_88], %347 {strides = array<i32>} : memref<1x8x16xf32, #tpu.memory_space<vmem>>, vector<1x8x16xf32>,
    return
  }
  func.func @transform_0(%arg0: i32, %arg1: i32) -> (i32, i32, i32) {
    %c0_i32 = arith.constant 0 : i32
    %c0_i32_0 = arith.constant 0 : i32
    return %arg0, %arg1, %c0_i32 : i32, i32, i32
  }
  func.func @transform_1(%arg0: i32, %arg1: i32) -> (i32, i32) {
    %c0_i32 = arith.constant 0 : i32
    %c0_i32_0 = arith.constant 0 : i32
    return %arg1, %c0_i32 : i32, i32
  }
  func.func @transform_2(%arg0: i32, %arg1: i32) -> (i32, i32) {
    %c0_i32 = arith.constant 0 : i32
    %c0_i32_0 = arith.constant 0 : i32
    %c0_i32_1 = arith.constant 0 : i32
    return %c0_i32, %c0_i32_0 : i32, i32
  }
  func.func @transform_3(%arg0: i32, %arg1: i32) -> (i32, i32) {
    %c0_i32 = arith.constant 0 : i32
    %c0_i32_0 = arith.constant 0 : i32
    %c0_i32_1 = arith.constant 0 : i32
    return %c0_i32, %c0_i32_0 : i32, i32
  }
  func.func @transform_4(%arg0: i32, %arg1: i32) -> (i32, i32) {
    %c0_i32 = arith.constant 0 : i32
    %c0_i32_0 = arith.constant 0 : i32
    %c0_i32_1 = arith.constant 0 : i32
    return %c0_i32, %c0_i32_0 : i32, i32
  }
  func.func @transform_5(%arg0: i32, %arg1: i32) -> (i32, i32) {
    %c0_i32 = arith.constant 0 : i32
    %c0_i32_0 = arith.constant 0 : i32
    %c0_i32_1 = arith.constant 0 : i32
    return %c0_i32, %c0_i32_0 : i32, i32
  }
  func.func @transform_6(%arg0: i32, %arg1: i32) -> (i32, i32) {
    %c0_i32 = arith.constant 0 : i32
    %c0_i32_0 = arith.constant 0 : i32
    %c0_i32_1 = arith.constant 0 : i32
    return %c0_i32, %c0_i32_0 : i32, i32
  }
  func.func @transform_7(%arg0: i32, %arg1: i32) -> (i32, i32) {
    %c0_i32 = arith.constant 0 : i32
    %c0_i32_0 = arith.constant 0 : i32
    %c0_i32_1 = arith.constant 0 : i32
    return %c0_i32, %c0_i32_0 : i32, i32
  }
  func.func @transform_8(%arg0: i32, %arg1: i32) -> (i32, i32) {
    %c0_i32 = arith.constant 0 : i32
    %c0_i32_0 = arith.constant 0 : i32
    %c0_i32_1 = arith.constant 0 : i32
    return %c0_i32, %c0_i32_0 : i32, i32
  }
  func.func @transform_9(%arg0: i32, %arg1: i32) -> (i32, i32) {
    %c0_i32 = arith.constant 0 : i32
    %c0_i32_0 = arith.constant 0 : i32
    %c0_i32_1 = arith.constant 0 : i32
    return %c0_i32, %c0_i32_0 : i32, i32
  }
  func.func @transform_10(%arg0: i32, %arg1: i32) -> (i32, i32, i32) {
    %c0_i32 = arith.constant 0 : i32
    %c0_i32_0 = arith.constant 0 : i32
    return %arg0, %arg1, %c0_i32 : i32, i32, i32
  }
}

</mosaic_0001>

<llo_original>
// kernel: tpu_custom_call.1
$region0: #{tpu_custom_call.1}
  #allocation0 [shape = 'u32[]', space=smem, size = 0x4, offset = 0x4, fixed_abs, tag = 'smem constant byte address 0x4 - core index']
  #allocation1 [shape = 'u32[144,128]{1,0:T(1,128)}', space=vmem, size = 0x12000, scoped, tag = 'internal scratch']
  #allocation2 [shape = 'f32[4,8,96]{2,1,0:T(8,128)}', space=vmem, size = 0x4000, scoped, tag = 'scratch operand']
  %s0 = inlined_call_operand.vmem [shape: f32[2,8,16], index: 0, kind: input, shape index: {}]
  %s1 = inlined_call_operand.hbm [shape: f32[8,128], index: 1, kind: input, shape index: {}]
  %s2 = inlined_call_operand.hbm [shape: bf16[4,32], index: 2, kind: input, shape index: {}]
  %s3 = inlined_call_operand.vmem [shape: f32[1,32], index: 3, kind: input, shape index: {}]
  %s4 = inlined_call_operand.vmem [shape: bf16[32,96], index: 4, kind: input, shape index: {}]
  %s5 = inlined_call_operand.hbm [shape: bf16[32,96], index: 5, kind: input, shape index: {}]
  %s6 = inlined_call_operand.vmem [shape: f32[1,96], index: 6, kind: input, shape index: {}]
  %s7 = inlined_call_operand.vmem [shape: f32[1,96], index: 7, kind: input, shape index: {}]
  %s8 = inlined_call_operand.vmem [shape: bf16[32,4], index: 8, kind: input, shape index: {}]
  %s9 = inlined_call_operand.vmem [shape: f32[1,4], index: 9, kind: input, shape index: {}]
  %s10 = inlined_call_operand.hbm [shape: f32[2,8,16], index: 10, kind: output, shape index: {}]
  %s11 = sld [smem:[#allocation0]]
  $region85: #{tpu_custom_call.1} parent=0
    _
  %s13 = ssub.s32 1, %s11
  %s14 = scalar_select 0, %s13, %s11
  $region1: #{tpu_custom_call.1} parent=0
    #allocation3 [shape = 'u8[4096]{0}', space=vmem, size = 0x1000, scoped, tag = 'input window, operand 1, single buffered']
    #allocation4 [shape = 's32[2]{0}', space=sflag, size = 0x8, scoped, tag = 'scoped memory for tpu_custom_call.1']
    #allocation5 [shape = 's32[2]{0}', space=sflag, size = 0x8, scoped, tag = 'scoped memory for tpu_custom_call.1']
    #allocation6 [shape = 'u8[1024]{0}', space=vmem, size = 0x400, scoped, tag = 'input window, operand 2, single buffered']
    #allocation7 [shape = 's32[1]{0}', space=sflag, size = 0x4, scoped, tag = 'scoped memory for tpu_custom_call.1']
    #allocation8 [shape = 'u8[8192]{0}', space=vmem, size = 0x2000, scoped, tag = 'input window, operand 5, single buffered']
    #allocation9 [shape = 'u8[8192]{0}', space=vmem, size = 0x2000, scoped, tag = 'output window, operand 0']
    %15 = vsyncpa [#allocation4], 0
    %16 = vsyncpa [#allocation7], 0
    %17 = vsyncpa [#allocation5], 0
    %s18 = scalar_lea.sflag [#allocation5], 1
    %19 = vsyncpa %s18, 0
    loop: start=0, step=1, limit=4
    $region2: #{tpu_custom_call.1} parent=1 // loop_pre_header
      _
    $region3: #{tpu_custom_call.1} parent=1 // loop_header
      %s21 = sphi 0, %s25
      %p22 = scmp.ge.s32.totalorder %s21, 4
      %s28 = sphi 0, %s40
      %s29 = sphi 0, %s36
      %s30 = sphi 0, %s28
      %s31 = sphi 0, %s29
      %s32 = sphi 0, %s30
      %s33 = sphi 0, %s31
      %s45 = sphi 0, %s47
      %s48 = sphi 0, %s45
      %s49 = sphi 0, %s48
      %s65 = sphi 0, %s49
      %s71 = sphi 0, %s73
      %s74 = sphi 0, %s71
      %s75 = sphi 0, %s74
      %s91 = sphi 0, %s75
      %s95 = sphi 0, %s95
      %s97 = sphi 0, %s95
      %s98 = sphi 0, %s97
      %s112 = sphi 0, %s98
      %s116 = sphi 0, %s116
      %s118 = sphi 0, %s116
      %s119 = sphi 0, %s118
      %s133 = sphi 0, %s119
      %s137 = sphi 0, %s137
      %s139 = sphi 0, %s137
      %s140 = sphi 0, %s139
      %s154 = sphi 0, %s140
      %s158 = sphi 0, %s158
      %s160 = sphi 0, %s158
      %s161 = sphi 0, %s160
      %s175 = sphi 0, %s161
      %s179 = sphi 0, %s179
      %s181 = sphi 0, %s179
      %s182 = sphi 0, %s181
      %s196 = sphi 0, %s182
      %s200 = sphi 0, %s200
      %s202 = sphi 0, %s200
      %s203 = sphi 0, %s202
      %s217 = sphi 0, %s203
      %s221 = sphi 0, %s221
      %s223 = sphi 0, %s221
      %s224 = sphi 0, %s223
      %s238 = sphi 0, %s224
      %s242 = sphi 0, %s242
      %s244 = sphi 0, %s242
      %s245 = sphi 0, %s244
      %s259 = sphi 0, %s245
      %s267 = sphi 0, %s269
      %s270 = sphi 0, %s267
      %s271 = sphi 0, %s270
      %s287 = sphi 0, %s271
    $region4: #{tpu_custom_call.1} parent=1 // loop_header_branch
      %24 = sbr.rel (%p22) target = $region8
    $region5: #{tpu_custom_call.1} parent=1 // loop_body
      %s26 = ssub.s32 %s21, 1
      %s27 = ssub.s32 %s21, 2
      %s34 = sadd.s32 1, %s29
      %p35 = scmp.ge.s32.totalorder %s34, 1
      %s36 = scalar_select %p35, 0, %s34
      %s37 = sadd.s32 1, %s28
      %s38 = scalar_select %p35, %s37, %s28
      %p39 = scmp.ge.s32.totalorder %s38, 2
      %s40 = scalar_select %p39, 0, %s38
      %s41 = ssub.s32 %s28, %s40
      %s42 = ssub.s32 %s29, %s36
      %s43 = sor.u32 %s41, %s42
      %p44 = scmp.eq.s32.totalorder %s43, 0
      %s46 = sadd.s32 %s45, 1
      %s47 = scalar_select %p44, %s45, %s46
      %p50 = pneg %p44
      %p51 = scmp.eq.s32.totalorder %s21, 1
      %p52 = por %p50, %p51
      %p53 = scmp.ne.s32.totalorder %s45, %s48
      %p54 = scmp.eq.s32.totalorder %s21, 0
      %p55 = por %p53, %p54
      %p56 = scmp.ne.s32.totalorder %s45, %s48
      %p57 = scmp.eq.s32.totalorder %s26, 1
      %p58 = por %p56, %p57
      %p59 = scmp.ne.s32.totalorder %s48, %s49
      %p60 = scmp.eq.s32.totalorder %s26, 0
      %p61 = por %p59, %p60
      %p62 = scmp.ne.s32.totalorder %s48, %s49
      %p63 = scmp.eq.s32.totalorder %s27, 1
      %p64 = por %p62, %p63
      %p66 = scmp.ne.s32.totalorder %s49, %s65
      %p67 = scmp.eq.s32.totalorder %s27, 0
      %p68 = por %p66, %p67
      %s69 = ssub.s32 %s29, %s36
      %p70 = scmp.eq.s32.totalorder %s69, 0
      %s72 = sadd.s32 %s71, 1
      %s73 = scalar_select %p70, %s71, %s72
      %p76 = pneg %p70
      %p77 = scmp.eq.s32.totalorder %s21, 1
      %p78 = por %p76, %p77
      %p79 = scmp.ne.s32.totalorder %s71, %s74
      %p80 = scmp.eq.s32.totalorder %s21, 0
      %p81 = por %p79, %p80
      %p82 = scmp.ne.s32.totalorder %s71, %s74
      %p83 = scmp.eq.s32.totalorder %s26, 1
      %p84 = por %p82, %p83
      %p85 = scmp.ne.s32.totalorder %s74, %s75
      %p86 = scmp.eq.s32.totalorder %s26, 0
      %p87 = por %p85, %p86
      %p88 = scmp.ne.s32.totalorder %s74, %s75
      %p89 = scmp.eq.s32.totalorder %s27, 1
      %p90 = por %p88, %p89
      %p92 = scmp.ne.s32.totalorder %s75, %s91
      %p93 = scmp.eq.s32.totalorder %s27, 0
      %p94 = por %p92, %p93
      %s96 = sadd.s32 %s95, 1
      %p99 = scmp.eq.s32.totalorder %s21, 1
      %p100 = scmp.ne.s32.totalorder %s95, %s97
      %p101 = scmp.eq.s32.totalorder %s21, 0
      %p102 = por %p100, %p101
      %p103 = scmp.ne.s32.totalorder %s95, %s97
      %p104 = scmp.eq.s32.totalorder %s26, 1
      %p105 = por %p103, %p104
      %p106 = scmp.ne.s32.totalorder %s97, %s98
      %p107 = scmp.eq.s32.totalorder %s26, 0
      %p108 = por %p106, %p107
      %p109 = scmp.ne.s32.totalorder %s97, %s98
      %p110 = scmp.eq.s32.totalorder %s27, 1
      %p111 = por %p109, %p110
      %p113 = scmp.ne.s32.totalorder %s98, %s112
      %p114 = scmp.eq.s32.totalorder %s27, 0
      %p115 = por %p113, %p114
      %s117 = sadd.s32 %s116, 1
      %p120 = scmp.eq.s32.totalorder %s21, 1
      %p121 = scmp.ne.s32.totalorder %s116, %s118
      %p122 = scmp.eq.s32.totalorder %s21, 0
      %p123 = por %p121, %p122
      %p124 = scmp.ne.s32.totalorder %s116, %s118
      %p125 = scmp.eq.s32.totalorder %s26, 1
      %p126 = por %p124, %p125
      %p127 = scmp.ne.s32.totalorder %s118, %s119
      %p128 = scmp.eq.s32.totalorder %s26, 0
      %p129 = por %p127, %p128
      %p130 = scmp.ne.s32.totalorder %s118, %s119
      %p131 = scmp.eq.s32.totalorder %s27, 1
      %p132 = por %p130, %p131
      %p134 = scmp.ne.s32.totalorder %s119, %s133
      %p135 = scmp.eq.s32.totalorder %s27, 0
      %p136 = por %p134, %p135
      %s138 = sadd.s32 %s137, 1
      %p141 = scmp.eq.s32.totalorder %s21, 1
      %p142 = scmp.ne.s32.totalorder %s137, %s139
      %p143 = scmp.eq.s32.totalorder %s21, 0
      %p144 = por %p142, %p143
      %p145 = scmp.ne.s32.totalorder %s137, %s139
      %p146 = scmp.eq.s32.totalorder %s26, 1
      %p147 = por %p145, %p146
      %p148 = scmp.ne.s32.totalorder %s139, %s140
      %p149 = scmp.eq.s32.totalorder %s26, 0
      %p150 = por %p148, %p149
      %p151 = scmp.ne.s32.totalorder %s139, %s140
      %p152 = scmp.eq.s32.totalorder %s27, 1
      %p153 = por %p151, %p152
      %p155 = scmp.ne.s32.totalorder %s140, %s154
      %p156 = scmp.eq.s32.totalorder %s27, 0
      %p157 = por %p155, %p156
      %s159 = sadd.s32 %s158, 1
      %p162 = scmp.eq.s32.totalorder %s21, 1
      %p163 = scmp.ne.s32.totalorder %s158, %s160
      %p164 = scmp.eq.s32.totalorder %s21, 0
      %p165 = por %p163, %p164
      %p166 = scmp.ne.s32.totalorder %s158, %s160
      %p167 = scmp.eq.s32.totalorder %s26, 1
      %p168 = por %p166, %p167
      %p169 = scmp.ne.s32.totalorder %s160, %s161
      %p170 = scmp.eq.s32.totalorder %s26, 0
      %p171 = por %p169, %p170
      %p172 = scmp.ne.s32.totalorder %s160, %s161
      %p173 = scmp.eq.s32.totalorder %s27, 1
      %p174 = por %p172, %p173
      %p176 = scmp.ne.s32.totalorder %s161, %s175
      %p177 = scmp.eq.s32.totalorder %s27, 0
      %p178 = por %p176, %p177
      %s180 = sadd.s32 %s179, 1
      %p183 = scmp.eq.s32.totalorder %s21, 1
      %p184 = scmp.ne.s32.totalorder %s179, %s181
      %p185 = scmp.eq.s32.totalorder %s21, 0
      %p186 = por %p184, %p185
      %p187 = scmp.ne.s32.totalorder %s179, %s181
      %p188 = scmp.eq.s32.totalorder %s26, 1
      %p189 = por %p187, %p188
      %p190 = scmp.ne.s32.totalorder %s181, %s182
      %p191 = scmp.eq.s32.totalorder %s26, 0
      %p192 = por %p190, %p191
      %p193 = scmp.ne.s32.totalorder %s181, %s182
      %p194 = scmp.eq.s32.totalorder %s27, 1
      %p195 = por %p193, %p194
      %p197 = scmp.ne.s32.totalorder %s182, %s196
      %p198 = scmp.eq.s32.totalorder %s27, 0
      %p199 = por %p197, %p198
      %s201 = sadd.s32 %s200, 1
      %p204 = scmp.eq.s32.totalorder %s21, 1
      %p205 = scmp.ne.s32.totalorder %s200, %s202
      %p206 = scmp.eq.s32.totalorder %s21, 0
      %p207 = por %p205, %p206
      %p208 = scmp.ne.s32.totalorder %s200, %s202
      %p209 = scmp.eq.s32.totalorder %s26, 1
      %p210 = por %p208, %p209
      %p211 = scmp.ne.s32.totalorder %s202, %s203
      %p212 = scmp.eq.s32.totalorder %s26, 0
      %p213 = por %p211, %p212
      %p214 = scmp.ne.s32.totalorder %s202, %s203
      %p215 = scmp.eq.s32.totalorder %s27, 1
      %p216 = por %p214, %p215
      %p218 = scmp.ne.s32.totalorder %s203, %s217
      %p219 = scmp.eq.s32.totalorder %s27, 0
      %p220 = por %p218, %p219
      %s222 = sadd.s32 %s221, 1
      %p225 = scmp.eq.s32.totalorder %s21, 1
      %p226 = scmp.ne.s32.totalorder %s221, %s223
      %p227 = scmp.eq.s32.totalorder %s21, 0
      %p228 = por %p226, %p227
      %p229 = scmp.ne.s32.totalorder %s221, %s223
      %p230 = scmp.eq.s32.totalorder %s26, 1
      %p231 = por %p229, %p230
      %p232 = scmp.ne.s32.totalorder %s223, %s224
      %p233 = scmp.eq.s32.totalorder %s26, 0
      %p234 = por %p232, %p233
      %p235 = scmp.ne.s32.totalorder %s223, %s224
      %p236 = scmp.eq.s32.totalorder %s27, 1
      %p237 = por %p235, %p236
      %p239 = scmp.ne.s32.totalorder %s224, %s238
      %p240 = scmp.eq.s32.totalorder %s27, 0
      %p241 = por %p239, %p240
      %s243 = sadd.s32 %s242, 1
      %p246 = scmp.eq.s32.totalorder %s21, 1
      %p247 = scmp.ne.s32.totalorder %s242, %s244
      %p248 = scmp.eq.s32.totalorder %s21, 0
      %p249 = por %p247, %p248
      %p250 = scmp.ne.s32.totalorder %s242, %s244
      %p251 = scmp.eq.s32.totalorder %s26, 1
      %p252 = por %p250, %p251
      %p253 = scmp.ne.s32.totalorder %s244, %s245
      %p254 = scmp.eq.s32.totalorder %s26, 0
      %p255 = por %p253, %p254
      %p256 = scmp.ne.s32.totalorder %s244, %s245
      %p257 = scmp.eq.s32.totalorder %s27, 1
      %p258 = por %p256, %p257
      %p260 = scmp.ne.s32.totalorder %s245, %s259
      %p261 = scmp.eq.s32.totalorder %s27, 0
      %p262 = por %p260, %p261
      %s263 = ssub.s32 %s28, %s40
      %s264 = ssub.s32 %s29, %s36
      %s265 = sor.u32 %s263, %s264
      %p266 = scmp.eq.s32.totalorder %s265, 0
      %s268 = sadd.s32 %s267, 1
      %s269 = scalar_select %p266, %s267, %s268
      %p272 = pneg %p266
      %p273 = scmp.eq.s32.totalorder %s21, 1
      %p274 = por %p272, %p273
      %p275 = scmp.ne.s32.totalorder %s267, %s270
      %p276 = scmp.eq.s32.totalorder %s21, 0
      %p277 = por %p275, %p276
      %p278 = scmp.ne.s32.totalorder %s267, %s270
      %p279 = scmp.eq.s32.totalorder %s26, 1
      %p280 = por %p278, %p279
      %p281 = scmp.ne.s32.totalorder %s270, %s271
      %p282 = scmp.eq.s32.totalorder %s26, 0
      %p283 = por %p281, %p282
      %p284 = scmp.ne.s32.totalorder %s270, %s271
      %p285 = scmp.eq.s32.totalorder %s27, 1
      %p286 = por %p284, %p285
      %p288 = scmp.ne.s32.totalorder %s271, %s287
      %p289 = scmp.eq.s32.totalorder %s27, 0
      %p290 = por %p288, %p289
      %p291 = scmp.le.s32.totalorder 1, %s21
      %p292 = scmp.lt.s32.totalorder %s21, 3
      %p293 = pnand %p291, %p292
      %p294 = pneg %p293
      // Predicated region
      $region9: #{tpu_custom_call.1} parent=5 // pred_check
        _
      $region10: #{tpu_custom_call.1} parent=5 // pred_check_branch
        %296 = sbr.rel (%p293) target = $region12
      $region11: #{tpu_custom_call.1} parent=5 // pred_region
        %s297 = ssub.s32 %s21, 1
        // Predicated region
        $region13: #{tpu_custom_call.1} parent=11 // pred_check
          %p298 = pneg %p87
        $region14: #{tpu_custom_call.1} parent=11 // pred_check_branch
          %300 = sbr.rel (%p298) target = $region16
        $region15: #{tpu_custom_call.1} parent=11 // pred_region
          %s302 = ssub.s32 128, 128
          %303 = vsyncadd [#allocation4], %s302
          %s304 = smul.addr %s31, 128
          %s305 = scalar_lea.hbm %s1, %s304
          %s307 = sshll.u32 [#allocation3], 4
          %s308 = int_to_ptr.vmem [resolvable:$true] %s307
          %310 = dma.hbm_to_vmem [thread:$0]  %s305, 128, %s308, [#allocation4]
        $region16: #{tpu_custom_call.1} parent=11 // pred_fallthru
          _
        // Predicated region
        $region17: #{tpu_custom_call.1} parent=11 // pred_check
          %p311 = pneg %p108
        $region18: #{tpu_custom_call.1} parent=11 // pred_check_branch
          %313 = sbr.rel (%p311) target = $region20
        $region19: #{tpu_custom_call.1} parent=11 // pred_region
          %s315 = ssub.s32 32, 32
          %316 = vsyncadd [#allocation7], %s315
          %s318 = sshll.u32 [#allocation6], 4
          %s319 = int_to_ptr.vmem [resolvable:$true] %s318
          %321 = dma.hbm_to_vmem [thread:$0]  %s2, 32, %s319, [#allocation7]
        $region20: #{tpu_custom_call.1} parent=11 // pred_fallthru
          _
        // Predicated region
        $region21: #{tpu_custom_call.1} parent=11 // pred_check
          %p322 = pneg %p129
        $region22: #{tpu_custom_call.1} parent=11 // pred_check_branch
          %324 = sbr.rel (%p322) target = $region24
        $region23: #{tpu_custom_call.1} parent=11 // pred_region
          _
        $region24: #{tpu_custom_call.1} parent=11 // pred_fallthru
          _
        // Predicated region
        $region25: #{tpu_custom_call.1} parent=11 // pred_check
          %p325 = pneg %p150
        $region26: #{tpu_custom_call.1} parent=11 // pred_check_branch
          %327 = sbr.rel (%p325) target = $region28
        $region27: #{tpu_custom_call.1} parent=11 // pred_region
          _
        $region28: #{tpu_custom_call.1} parent=11 // pred_fallthru
          _
        // Predicated region
        $region29: #{tpu_custom_call.1} parent=11 // pred_check
          %p328 = pneg %p171
        $region30: #{tpu_custom_call.1} parent=11 // pred_check_branch
          %330 = sbr.rel (%p328) target = $region32
        $region31: #{tpu_custom_call.1} parent=11 // pred_region
          %s332 = ssub.s32 256, 256
          %333 = vsyncadd [#allocation7], %s332
          %s334 = sshll.u32 [#allocation8], 4
          %s335 = int_to_ptr.vmem [resolvable:$true] %s334
          %340 = dma.hbm_to_vmem [thread:$0]  %s5, 256, %s335, [#allocation7], 64, 64, 4
        $region32: #{tpu_custom_call.1} parent=11 // pred_fallthru
          _
        // Predicated region
        $region33: #{tpu_custom_call.1} parent=11 // pred_check
          %p341 = pneg %p192
        $region34: #{tpu_custom_call.1} parent=11 // pred_check_branch
          %343 = sbr.rel (%p341) target = $region36
        $region35: #{tpu_custom_call.1} parent=11 // pred_region
          _
        $region36: #{tpu_custom_call.1} parent=11 // pred_fallthru
          _
        // Predicated region
        $region37: #{tpu_custom_call.1} parent=11 // pred_check
          %p344 = pneg %p213
        $region38: #{tpu_custom_call.1} parent=11 // pred_check_branch
          %346 = sbr.rel (%p344) target = $region40
        $region39: #{tpu_custom_call.1} parent=11 // pred_region
          _
        $region40: #{tpu_custom_call.1} parent=11 // pred_fallthru
          _
        // Predicated region
        $region41: #{tpu_custom_call.1} parent=11 // pred_check
          %p347 = pneg %p234
        $region42: #{tpu_custom_call.1} parent=11 // pred_check_branch
          %349 = sbr.rel (%p347) target = $region44
        $region43: #{tpu_custom_call.1} parent=11 // pred_region
          _
        $region44: #{tpu_custom_call.1} parent=11 // pred_fallthru
          _
        // Predicated region
        $region45: #{tpu_custom_call.1} parent=11 // pred_check
          %p350 = pneg %p255
        $region46: #{tpu_custom_call.1} parent=11 // pred_check_branch
          %352 = sbr.rel (%p350) target = $region48
        $region47: #{tpu_custom_call.1} parent=11 // pred_region
          _
        $region48: #{tpu_custom_call.1} parent=11 // pred_fallthru
          _
      $region12: #{tpu_custom_call.1} parent=5 // pred_fallthru
        _
      %p353 = scmp.lt.s32.totalorder %s21, 2
      // Predicated region
      $region49: #{tpu_custom_call.1} parent=5 // pred_check
        %p354 = pneg %p353
      $region50: #{tpu_custom_call.1} parent=5 // pred_check_branch
        %356 = sbr.rel (%p354) target = $region52
      $region51: #{tpu_custom_call.1} parent=5 // pred_region
        // Predicated region
        $region53: #{tpu_custom_call.1} parent=51 // pred_check
          %p357 = pneg %p55
        $region54: #{tpu_custom_call.1} parent=51 // pred_check_branch
          %359 = sbr.rel (%p357) target = $region56
        $region55: #{tpu_custom_call.1} parent=51 // pred_region
          %p360 = scmp.lt.s32.totalorder %s28, 1
          %s361 = scalar_select %p360, %s28, 1
          %p362 = scmp.lt.s32.totalorder %s29, 0
          %s363 = scalar_select %p362, %s29, 0
          %s364 = sadd.s32 %s363, %s361
          %s365 = smul.addr %s364, 8
          %s366 = scalar_lea.vmem %s0, %s365
        $region56: #{tpu_custom_call.1} parent=51 // pred_fallthru
          _
      $region52: #{tpu_custom_call.1} parent=5 // pred_fallthru
        _
      %p367 = scmp.le.s32.totalorder 1, %s21
      %p368 = scmp.lt.s32.totalorder %s21, 3
      %p369 = pnand %p367, %p368
      %p370 = pneg %p369
      // Predicated region
      $region57: #{tpu_custom_call.1} parent=5 // pred_check
        _
      $region58: #{tpu_custom_call.1} parent=5 // pred_check_branch
        %372 = sbr.rel (%p369) target = $region60
      $region59: #{tpu_custom_call.1} parent=5 // pred_region
        %s373 = ssub.s32 %s21, 1
        // Predicated region
        $region61: #{tpu_custom_call.1} parent=59 // pred_check
          %p374 = pneg %p87
        $region62: #{tpu_custom_call.1} parent=59 // pred_check_branch
          %376 = sbr.rel (%p374) target = $region64
        $region63: #{tpu_custom_call.1} parent=59 // pred_region
          %377 = dma.done [#allocation4], 128
        $region64: #{tpu_custom_call.1} parent=59 // pred_fallthru
          _
        // Predicated region
        $region65: #{tpu_custom_call.1} parent=59 // pred_check
          %p378 = pneg %p108
        $region66: #{tpu_custom_call.1} parent=59 // pred_check_branch
          %380 = sbr.rel (%p378) target = $region68
        $region67: #{tpu_custom_call.1} parent=59 // pred_region
          %381 = dma.done [#allocation7], 32
        $region68: #{tpu_custom_call.1} parent=59 // pred_fallthru
          _
        // Predicated region
        $region69: #{tpu_custom_call.1} parent=59 // pred_check
          %p382 = pneg %p171
        $region70: #{tpu_custom_call.1} parent=59 // pred_check_branch
          %384 = sbr.rel (%p382) target = $region72
        $region71: #{tpu_custom_call.1} parent=59 // pred_region
          %385 = dma.done [#allocation7], 256
        $region72: #{tpu_custom_call.1} parent=59 // pred_fallthru
          _
        %p386 = scmp.lt.s32.totalorder %s30, 1
        %s387 = scalar_select %p386, %s30, 1
        %p388 = scmp.lt.s32.totalorder %s31, 0
        %s389 = scalar_select %p388, %s31, 0
        %s390 = sadd.s32 %s389, %s387
        %s391 = smul.addr %s390, 8
        %s392 = scalar_lea.vmem %s0, %s391
        %p393 = pneg %p61
        %p394 = pneg %p58
        %p395 = pneg %p87
        %p396 = pneg %p84
        %p397 = pneg %p108
        %p398 = pneg %p105
        %p399 = pneg %p129
        %p400 = pneg %p126
        %p401 = pneg %p150
        %p402 = pneg %p147
        %p403 = pneg %p171
        %p404 = pneg %p168
        %p405 = pneg %p192
        %p406 = pneg %p189
        %p407 = pneg %p213
        %p408 = pneg %p210
        %p409 = pneg %p234
        %p410 = pneg %p231
        %p411 = pneg %p255
        %p412 = pneg %p252
        %p413 = pneg %p283
        %p414 = pneg %p280
        %s415 = sand.u32 %s270, 1
        %s416 = scalar_lea.sflag [#allocation5], %s415
        %s417 = sand.u32 %s270, 1
        %s418 = smul.addr %s417, 8
        %s419 = scalar_lea.vmem [#allocation9], %s418
        %p420 = scmp.lt.s32.totalorder %s30, 1
        %s421 = scalar_select %p420, %s30, 1
        %p422 = scmp.lt.s32.totalorder %s31, 0
        %s423 = scalar_select %p422, %s31, 0
        %s424 = sadd.s32 %s423, %s421
        %s425 = smul.addr %s424, 8
        %s426 = scalar_lea.vmem %s0, %s425
        %v428 = vld [vmem:[#allocation6] sm:$0x3]
        %v429 = vld [vmem:[%s3] sm:$0x1]
        %v430 = vld [vmem:[%s4] sm:$0xf]
        %v431 = vld [vmem:[%s4 + $0x4] sm:$0xf]
        %v432 = vld [vmem:[%s4 + $0x8] sm:$0xf]
        %v433 = vld [vmem:[%s4 + $0xc] sm:$0xf]
        %v434 = vld [vmem:[#allocation8] sm:$0xf]
        %v435 = vld [vmem:[#allocation8 + $0x4] sm:$0xf]
        %v436 = vld [vmem:[#allocation8 + $0x8] sm:$0xf]
        %v437 = vld [vmem:[#allocation8 + $0xc] sm:$0xf]
        %v438 = vld [vmem:[%s6] sm:$0x1]
        %v439 = vld [vmem:[%s7] sm:$0x1]
        %v440 = vld [vmem:[%s426] sm:$0xff]
        %v441 = vpack.c.bf16 %v440, %v440
        %v443 = vlaneseq
        %v444 = vshrl.u32 %v443, 7
        %v445 = vsub.s32 0, %v444
        %v446 = vrot.slane %v429, %v445
        %vm448 = vcmask 31744
        %v450 = vsel %vm448, %v441, 0
        %vm452 = vcmask 1041408
        %v454 = vsel %vm452, %v428, 0
        %456 = vmatprep.subr.bf16.mxu0 0
        %457 = vmatpush1.bf16.msra.mxu0 %v454
        %458 = vmatprep.subr.bf16.mxu0 0
        %459 = vmatpush1.bf16.msra.mxu0 0
        %460 = vmatprep.subr.bf16.mxu0 0
        %461 = vmatpush1.bf16.msra.mxu0 0
        %462 = vmatprep.subr.bf16.mxu0 0
        %463 = vmatpush1.bf16.msra.mxu0 0
        %464 = vmatprep.subr.bf16.mxu0 0
        %465 = vmatpush1.bf16.msra.mxu0 0
        %466 = vmatprep.subr.bf16.mxu0 0
        %467 = vmatpush1.bf16.msra.mxu0 0
        %468 = vmatprep.subr.bf16.mxu0 0
        %469 = vmatpush1.bf16.msra.mxu0 0
        %470 = vmatprep.subr.bf16.mxu0 0
        %471 = vmatpush1.bf16.msra.mxu0 0
        %472 = vmatprep.subr.bf16.mxu0 0
        %473 = vmatpush1.bf16.msra.mxu0 0
        %474 = vmatprep.subr.bf16.mxu0 0
        %475 = vmatpush1.bf16.msra.mxu0 0
        %476 = vmatprep.subr.bf16.mxu0 0
        %477 = vmatpush1.bf16.msra.mxu0 0
        %478 = vmatprep.subr.bf16.mxu0 0
        %479 = vmatpush1.bf16.msra.mxu0 0
        %480 = vmatprep.subr.bf16.mxu0 0
        %481 = vmatpush1.bf16.msra.mxu0 0
        %482 = vmatprep.subr.bf16.mxu0 0
        %483 = vmatpush1.bf16.msra.mxu0 0
        %484 = vmatprep.subr.bf16.mxu0 0
        %485 = vmatpush1.bf16.msra.mxu0 0
        %486 = vmatprep.subr.bf16.mxu0 0
        %487 = vmatpush1.bf16.msra.mxu0 0
        %488 = vmatprep.mubr.bf16.mxu0 0
        %489 = vmatmul.mubr.bf16.gmra.mrb[0].mxu0 %v450
        %v490 = vpop.f32.mrb[0].mxu0
        %v491 = vadd.f32 %v446, %v490
        %v492 = vpop.f32.mrb[0].mxu0
        %v493 = vpop.f32.mrb[0].mxu0
        %v494 = vpop.f32.mrb[0].mxu0
        %495 = vdwg.mxu0
        %v496 = vmax.f32 %v491, 0.0
        %v497 = vpack.c.bf16 %v496, %v496
        %v499 = vlaneseq
        %v500 = vshrl.u32 %v499, 7
        %v501 = vsub.s32 0, %v500
        %v502 = vrot.slane %v438, %v501
        %v508 = vunpack.c.l.b16 %v430
        %v509 = vunpack.c.l.b16 %v431
        %v510 = vunpack.c.l.b16 %v432
        %v511 = vunpack.c.l.b16 %v433
        %v512 = vpack.c.b16 %v509, %v508
        %v513 = vpack.c.b16 %v511, %v510
        %vm516 = vcmask 261120
        %v518 = vsel %vm516, %v497, 0
        %520 = vmatprep.subr.bf16.mxu0 0
        %521 = vmatpush1.bf16.msra.mxu0 %v512
        %522 = vmatprep.subr.bf16.mxu0 0
        %523 = vmatpush1.bf16.msra.mxu0 %v513
        %524 = vmatprep.subr.bf16.mxu0 0
        %525 = vmatpush1.bf16.msra.mxu0 0
        %526 = vmatprep.subr.bf16.mxu0 0
        %527 = vmatpush1.bf16.msra.mxu0 0
        %528 = vmatprep.subr.bf16.mxu0 0
        %529 = vmatpush1.bf16.msra.mxu0 0
        %530 = vmatprep.subr.bf16.mxu0 0
        %531 = vmatpush1.bf16.msra.mxu0 0
        %532 = vmatprep.subr.bf16.mxu0 0
        %533 = vmatpush1.bf16.msra.mxu0 0
        %534 = vmatprep.subr.bf16.mxu0 0
        %535 = vmatpush1.bf16.msra.mxu0 0
        %536 = vmatprep.subr.bf16.mxu0 0
        %537 = vmatpush1.bf16.msra.mxu0 0
        %538 = vmatprep.subr.bf16.mxu0 0
        %539 = vmatpush1.bf16.msra.mxu0 0
        %540 = vmatprep.subr.bf16.mxu0 0
        %541 = vmatpush1.bf16.msra.mxu0 0
        %542 = vmatprep.subr.bf16.mxu0 0
        %543 = vmatpush1.bf16.msra.mxu0 0
        %544 = vmatprep.subr.bf16.mxu0 0
        %545 = vmatpush1.bf16.msra.mxu0 0
        %546 = vmatprep.subr.bf16.mxu0 0
        %547 = vmatpush1.bf16.msra.mxu0 0
        %548 = vmatprep.subr.bf16.mxu0 0
        %549 = vmatpush1.bf16.msra.mxu0 0
        %550 = vmatprep.subr.bf16.mxu0 0
        %551 = vmatpush1.bf16.msra.mxu0 0
        %552 = vmatprep.mubr.bf16.mxu0 0
        %553 = vmatmul.mubr.bf16.gmra.mrb[0].mxu0 %v518
        %v554 = vpop.f32.mrb[0].mxu0
        %v555 = vadd.f32 %v502, %v554
        %v556 = vpop.f32.mrb[0].mxu0
        %v557 = vpop.f32.mrb[0].mxu0
        %v558 = vpop.f32.mrb[0].mxu0
        %559 = vdwg.mxu0
        %vm560 = vcmask 785408
        %561 = vst.msk [vmem:[#allocation2] sm:$0xff] %vm560, %v555
        %563 = vrot.lane.b32.xlu0 %v441, 124
        %v564 = vpop.permute.xlu0 %563
        %v566 = vsel %vm448, %v564, 0
        %568 = vmatprep.subr.bf16.mxu0 0
        %569 = vmatpush1.bf16.msra.mxu0 %v454
        %570 = vmatprep.subr.bf16.mxu0 0
        %571 = vmatpush1.bf16.msra.mxu0 0
        %572 = vmatprep.subr.bf16.mxu0 0
        %573 = vmatpush1.bf16.msra.mxu0 0
        %574 = vmatprep.subr.bf16.mxu0 0
        %575 = vmatpush1.bf16.msra.mxu0 0
        %576 = vmatprep.subr.bf16.mxu0 0
        %577 = vmatpush1.bf16.msra.mxu0 0
        %578 = vmatprep.subr.bf16.mxu0 0
        %579 = vmatpush1.bf16.msra.mxu0 0
        %580 = vmatprep.subr.bf16.mxu0 0
        %581 = vmatpush1.bf16.msra.mxu0 0
        %582 = vmatprep.subr.bf16.mxu0 0
        %583 = vmatpush1.bf16.msra.mxu0 0
        %584 = vmatprep.subr.bf16.mxu0 0
        %585 = vmatpush1.bf16.msra.mxu0 0
        %586 = vmatprep.subr.bf16.mxu0 0
        %587 = vmatpush1.bf16.msra.mxu0 0
        %588 = vmatprep.subr.bf16.mxu0 0
        %589 = vmatpush1.bf16.msra.mxu0 0
        %590 = vmatprep.subr.bf16.mxu0 0
        %591 = vmatpush1.bf16.msra.mxu0 0
        %592 = vmatprep.subr.bf16.mxu0 0
        %593 = vmatpush1.bf16.msra.mxu0 0
        %594 = vmatprep.subr.bf16.mxu0 0
        %595 = vmatpush1.bf16.msra.mxu0 0
        %596 = vmatprep.subr.bf16.mxu0 0
        %597 = vmatpush1.bf16.msra.mxu0 0
        %598 = vmatprep.subr.bf16.mxu0 0
        %599 = vmatpush1.bf16.msra.mxu0 0
        %600 = vmatprep.mubr.bf16.mxu0 0
        %601 = vmatmul.mubr.bf16.gmra.mrb[0].mxu0 %v566
        %v602 = vpop.f32.mrb[0].mxu0
        %v603 = vadd.f32 %v446, %v602
        %v604 = vpop.f32.mrb[0].mxu0
        %v605 = vpop.f32.mrb[0].mxu0
        %v606 = vpop.f32.mrb[0].mxu0
        %607 = vdwg.mxu0
        %v608 = vmax.f32 %v603, 0.0
        %v609 = vpack.c.bf16 %v608, %v608
        %v611 = vsel %vm516, %v609, 0
        %613 = vmatprep.subr.bf16.mxu0 0
        %614 = vmatpush1.bf16.msra.mxu0 %v512
        %615 = vmatprep.subr.bf16.mxu0 0
        %616 = vmatpush1.bf16.msra.mxu0 %v513
        %617 = vmatprep.subr.bf16.mxu0 0
        %618 = vmatpush1.bf16.msra.mxu0 0
        %619 = vmatprep.subr.bf16.mxu0 0
        %620 = vmatpush1.bf16.msra.mxu0 0
        %621 = vmatprep.subr.bf16.mxu0 0
        %622 = vmatpush1.bf16.msra.mxu0 0
        %623 = vmatprep.subr.bf16.mxu0 0
        %624 = vmatpush1.bf16.msra.mxu0 0
        %625 = vmatprep.subr.bf16.mxu0 0
        %626 = vmatpush1.bf16.msra.mxu0 0
        %627 = vmatprep.subr.bf16.mxu0 0
        %628 = vmatpush1.bf16.msra.mxu0 0
        %629 = vmatprep.subr.bf16.mxu0 0
        %630 = vmatpush1.bf16.msra.mxu0 0
        %631 = vmatprep.subr.bf16.mxu0 0
        %632 = vmatpush1.bf16.msra.mxu0 0
        %633 = vmatprep.subr.bf16.mxu0 0
        %634 = vmatpush1.bf16.msra.mxu0 0
        %635 = vmatprep.subr.bf16.mxu0 0
        %636 = vmatpush1.bf16.msra.mxu0 0
        %637 = vmatprep.subr.bf16.mxu0 0
        %638 = vmatpush1.bf16.msra.mxu0 0
        %639 = vmatprep.subr.bf16.mxu0 0
        %640 = vmatpush1.bf16.msra.mxu0 0
        %641 = vmatprep.subr.bf16.mxu0 0
        %642 = vmatpush1.bf16.msra.mxu0 0
        %643 = vmatprep.subr.bf16.mxu0 0
        %644 = vmatpush1.bf16.msra.mxu0 0
        %645 = vmatprep.mubr.bf16.mxu0 0
        %646 = vmatmul.mubr.bf16.gmra.mrb[0].mxu0 %v611
        %v647 = vpop.f32.mrb[0].mxu0
        %v648 = vadd.f32 %v502, %v647
        %v649 = vpop.f32.mrb[0].mxu0
        %v650 = vpop.f32.mrb[0].mxu0
        %v651 = vpop.f32.mrb[0].mxu0
        %652 = vdwg.mxu0
        %s653 = scalar_lea.vmem [#allocation2], 8
        %654 = vst.msk [vmem:[%s653] sm:$0xff] %vm560, %v648
        %655 = vrot.lane.b32.xlu0 %v441, 120
        %v656 = vpop.permute.xlu0 %655
        %v658 = vsel %vm448, %v656, 0
        %660 = vmatprep.subr.bf16.mxu0 0
        %661 = vmatpush1.bf16.msra.mxu0 %v454
        %662 = vmatprep.subr.bf16.mxu0 0
        %663 = vmatpush1.bf16.msra.mxu0 0
        %664 = vmatprep.subr.bf16.mxu0 0
        %665 = vmatpush1.bf16.msra.mxu0 0
        %666 = vmatprep.subr.bf16.mxu0 0
        %667 = vmatpush1.bf16.msra.mxu0 0
        %668 = vmatprep.subr.bf16.mxu0 0
        %669 = vmatpush1.bf16.msra.mxu0 0
        %670 = vmatprep.subr.bf16.mxu0 0
        %671 = vmatpush1.bf16.msra.mxu0 0
        %672 = vmatprep.subr.bf16.mxu0 0
        %673 = vmatpush1.bf16.msra.mxu0 0
        %674 = vmatprep.subr.bf16.mxu0 0
        %675 = vmatpush1.bf16.msra.mxu0 0
        %676 = vmatprep.subr.bf16.mxu0 0
        %677 = vmatpush1.bf16.msra.mxu0 0
        %678 = vmatprep.subr.bf16.mxu0 0
        %679 = vmatpush1.bf16.msra.mxu0 0
        %680 = vmatprep.subr.bf16.mxu0 0
        %681 = vmatpush1.bf16.msra.mxu0 0
        %682 = vmatprep.subr.bf16.mxu0 0
        %683 = vmatpush1.bf16.msra.mxu0 0
        %684 = vmatprep.subr.bf16.mxu0 0
        %685 = vmatpush1.bf16.msra.mxu0 0
        %686 = vmatprep.subr.bf16.mxu0 0
        %687 = vmatpush1.bf16.msra.mxu0 0
        %688 = vmatprep.subr.bf16.mxu0 0
        %689 = vmatpush1.bf16.msra.mxu0 0
        %690 = vmatprep.subr.bf16.mxu0 0
        %691 = vmatpush1.bf16.msra.mxu0 0
        %692 = vmatprep.mubr.bf16.mxu0 0
        %693 = vmatmul.mubr.bf16.gmra.mrb[0].mxu0 %v658
        %v694 = vpop.f32.mrb[0].mxu0
        %v695 = vadd.f32 %v446, %v694
        %v696 = vpop.f32.mrb[0].mxu0
        %v697 = vpop.f32.mrb[0].mxu0
        %v698 = vpop.f32.mrb[0].mxu0
        %699 = vdwg.mxu0
        %v700 = vmax.f32 %v695, 0.0
        %v701 = vpack.c.bf16 %v700, %v700
        %v703 = vsel %vm516, %v701, 0
        %705 = vmatprep.subr.bf16.mxu0 0
        %706 = vmatpush1.bf16.msra.mxu0 %v512
        %707 = vmatprep.subr.bf16.mxu0 0
        %708 = vmatpush1.bf16.msra.mxu0 %v513
        %709 = vmatprep.subr.bf16.mxu0 0
        %710 = vmatpush1.bf16.msra.mxu0 0
        %711 = vmatprep.subr.bf16.mxu0 0
        %712 = vmatpush1.bf16.msra.mxu0 0
        %713 = vmatprep.subr.bf16.mxu0 0
        %714 = vmatpush1.bf16.msra.mxu0 0
        %715 = vmatprep.subr.bf16.mxu0 0
        %716 = vmatpush1.bf16.msra.mxu0 0
        %717 = vmatprep.subr.bf16.mxu0 0
        %718 = vmatpush1.bf16.msra.mxu0 0
        %719 = vmatprep.subr.bf16.mxu0 0
        %720 = vmatpush1.bf16.msra.mxu0 0
        %721 = vmatprep.subr.bf16.mxu0 0
        %722 = vmatpush1.bf16.msra.mxu0 0
        %723 = vmatprep.subr.bf16.mxu0 0
        %724 = vmatpush1.bf16.msra.mxu0 0
        %725 = vmatprep.subr.bf16.mxu0 0
        %726 = vmatpush1.bf16.msra.mxu0 0
        %727 = vmatprep.subr.bf16.mxu0 0
        %728 = vmatpush1.bf16.msra.mxu0 0
        %729 = vmatprep.subr.bf16.mxu0 0
        %730 = vmatpush1.bf16.msra.mxu0 0
        %731 = vmatprep.subr.bf16.mxu0 0
        %732 = vmatpush1.bf16.msra.mxu0 0
        %733 = vmatprep.subr.bf16.mxu0 0
        %734 = vmatpush1.bf16.msra.mxu0 0
        %735 = vmatprep.subr.bf16.mxu0 0
        %736 = vmatpush1.bf16.msra.mxu0 0
        %737 = vmatprep.mubr.bf16.mxu0 0
        %738 = vmatmul.mubr.bf16.gmra.mrb[0].mxu0 %v703
        %v739 = vpop.f32.mrb[0].mxu0
        %v740 = vadd.f32 %v502, %v739
        %v741 = vpop.f32.mrb[0].mxu0
        %v742 = vpop.f32.mrb[0].mxu0
        %v743 = vpop.f32.mrb[0].mxu0
        %744 = vdwg.mxu0
        %s745 = scalar_lea.vmem [#allocation2], 16
        %746 = vst.msk [vmem:[%s745] sm:$0xff] %vm560, %v740
        %747 = vrot.lane.b32.xlu0 %v441, 116
        %v748 = vpop.permute.xlu0 %747
        %v750 = vsel %vm448, %v748, 0
        %752 = vmatprep.subr.bf16.mxu0 0
        %753 = vmatpush1.bf16.msra.mxu0 %v454
        %754 = vmatprep.subr.bf16.mxu0 0
        %755 = vmatpush1.bf16.msra.mxu0 0
        %756 = vmatprep.subr.bf16.mxu0 0
        %757 = vmatpush1.bf16.msra.mxu0 0
        %758 = vmatprep.subr.bf16.mxu0 0
        %759 = vmatpush1.bf16.msra.mxu0 0
        %760 = vmatprep.subr.bf16.mxu0 0
        %761 = vmatpush1.bf16.msra.mxu0 0
        %762 = vmatprep.subr.bf16.mxu0 0
        %763 = vmatpush1.bf16.msra.mxu0 0
        %764 = vmatprep.subr.bf16.mxu0 0
        %765 = vmatpush1.bf16.msra.mxu0 0
        %766 = vmatprep.subr.bf16.mxu0 0
        %767 = vmatpush1.bf16.msra.mxu0 0
        %768 = vmatprep.subr.bf16.mxu0 0
        %769 = vmatpush1.bf16.msra.mxu0 0
        %770 = vmatprep.subr.bf16.mxu0 0
        %771 = vmatpush1.bf16.msra.mxu0 0
        %772 = vmatprep.subr.bf16.mxu0 0
        %773 = vmatpush1.bf16.msra.mxu0 0
        %774 = vmatprep.subr.bf16.mxu0 0
        %775 = vmatpush1.bf16.msra.mxu0 0
        %776 = vmatprep.subr.bf16.mxu0 0
        %777 = vmatpush1.bf16.msra.mxu0 0
        %778 = vmatprep.subr.bf16.mxu0 0
        %779 = vmatpush1.bf16.msra.mxu0 0
        %780 = vmatprep.subr.bf16.mxu0 0
        %781 = vmatpush1.bf16.msra.mxu0 0
        %782 = vmatprep.subr.bf16.mxu0 0
        %783 = vmatpush1.bf16.msra.mxu0 0
        %784 = vmatprep.mubr.bf16.mxu0 0
        %785 = vmatmul.mubr.bf16.gmra.mrb[0].mxu0 %v750
        %v786 = vpop.f32.mrb[0].mxu0
        %v787 = vadd.f32 %v446, %v786
        %v788 = vpop.f32.mrb[0].mxu0
        %v789 = vpop.f32.mrb[0].mxu0
        %v790 = vpop.f32.mrb[0].mxu0
        %791 = vdwg.mxu0
        %v792 = vmax.f32 %v787, 0.0
        %v793 = vpack.c.bf16 %v792, %v792
        %v795 = vsel %vm516, %v793, 0
        %797 = vmatprep.subr.bf16.mxu0 0
        %798 = vmatpush1.bf16.msra.mxu0 %v512
        %799 = vmatprep.subr.bf16.mxu0 0
        %800 = vmatpush1.bf16.msra.mxu0 %v513
        %801 = vmatprep.subr.bf16.mxu0 0
        %802 = vmatpush1.bf16.msra.mxu0 0
        %803 = vmatprep.subr.bf16.mxu0 0
        %804 = vmatpush1.bf16.msra.mxu0 0
        %805 = vmatprep.subr.bf16.mxu0 0
        %806 = vmatpush1.bf16.msra.mxu0 0
        %807 = vmatprep.subr.bf16.mxu0 0
        %808 = vmatpush1.bf16.msra.mxu0 0
        %809 = vmatprep.subr.bf16.mxu0 0
        %810 = vmatpush1.bf16.msra.mxu0 0
        %811 = vmatprep.subr.bf16.mxu0 0
        %812 = vmatpush1.bf16.msra.mxu0 0
        %813 = vmatprep.subr.bf16.mxu0 0
        %814 = vmatpush1.bf16.msra.mxu0 0
        %815 = vmatprep.subr.bf16.mxu0 0
        %816 = vmatpush1.bf16.msra.mxu0 0
        %817 = vmatprep.subr.bf16.mxu0 0
        %818 = vmatpush1.bf16.msra.mxu0 0
        %819 = vmatprep.subr.bf16.mxu0 0
        %820 = vmatpush1.bf16.msra.mxu0 0
        %821 = vmatprep.subr.bf16.mxu0 0
        %822 = vmatpush1.bf16.msra.mxu0 0
        %823 = vmatprep.subr.bf16.mxu0 0
        %824 = vmatpush1.bf16.msra.mxu0 0
        %825 = vmatprep.subr.bf16.mxu0 0
        %826 = vmatpush1.bf16.msra.mxu0 0
        %827 = vmatprep.subr.bf16.mxu0 0
        %828 = vmatpush1.bf16.msra.mxu0 0
        %829 = vmatprep.mubr.bf16.mxu0 0
        %830 = vmatmul.mubr.bf16.gmra.mrb[0].mxu0 %v795
        %v831 = vpop.f32.mrb[0].mxu0
        %v832 = vadd.f32 %v502, %v831
        %v833 = vpop.f32.mrb[0].mxu0
        %v834 = vpop.f32.mrb[0].mxu0
        %v835 = vpop.f32.mrb[0].mxu0
        %836 = vdwg.mxu0
        %s837 = scalar_lea.vmem [#allocation2], 24
        %838 = vst.msk [vmem:[%s837] sm:$0xff] %vm560, %v832
        %v840 = vlaneseq
        %v841 = vshrl.u32 %v840, 7
        %v842 = vsub.s32 0, %v841
        %v843 = vrot.slane %v439, %v842
        %v849 = vunpack.c.l.b16 %v434
        %v850 = vunpack.c.l.b16 %v435
        %v851 = vunpack.c.l.b16 %v436
        %v852 = vunpack.c.l.b16 %v437
        %v853 = vpack.c.b16 %v850, %v849
        %v854 = vpack.c.b16 %v852, %v851
        %v858 = vsel %vm516, 0, 0
        %860 = vmatprep.subr.bf16.mxu0 0
        %861 = vmatpush1.bf16.msra.mxu0 %v853
        %862 = vmatprep.subr.bf16.mxu0 0
        %863 = vmatpush1.bf16.msra.mxu0 %v854
        %864 = vmatprep.subr.bf16.mxu0 0
        %865 = vmatpush1.bf16.msra.mxu0 0
        %866 = vmatprep.subr.bf16.mxu0 0
        %867 = vmatpush1.bf16.msra.mxu0 0
        %868 = vmatprep.subr.bf16.mxu0 0
        %869 = vmatpush1.bf16.msra.mxu0 0
        %870 = vmatprep.subr.bf16.mxu0 0
        %871 = vmatpush1.bf16.msra.mxu0 0
        %872 = vmatprep.subr.bf16.mxu0 0
        %873 = vmatpush1.bf16.msra.mxu0 0
        %874 = vmatprep.subr.bf16.mxu0 0
        %875 = vmatpush1.bf16.msra.mxu0 0
        %876 = vmatprep.subr.bf16.mxu0 0
        %877 = vmatpush1.bf16.msra.mxu0 0
        %878 = vmatprep.subr.bf16.mxu0 0
        %879 = vmatpush1.bf16.msra.mxu0 0
        %880 = vmatprep.subr.bf16.mxu0 0
        %881 = vmatpush1.bf16.msra.mxu0 0
        %882 = vmatprep.subr.bf16.mxu0 0
        %883 = vmatpush1.bf16.msra.mxu0 0
        %884 = vmatprep.subr.bf16.mxu0 0
        %885 = vmatpush1.bf16.msra.mxu0 0
        %886 = vmatprep.subr.bf16.mxu0 0
        %887 = vmatpush1.bf16.msra.mxu0 0
        %888 = vmatprep.subr.bf16.mxu0 0
        %889 = vmatpush1.bf16.msra.mxu0 0
        %890 = vmatprep.subr.bf16.mxu0 0
        %891 = vmatpush1.bf16.msra.mxu0 0
        %892 = vmatprep.mubr.bf16.mxu0 0
        %893 = vmatmul.mubr.bf16.gmra.mrb[0].mxu0 %v858
        %v894 = vpop.f32.mrb[0].mxu0
        %v895 = vadd.f32 %v843, %v894
        %v896 = vpop.f32.mrb[0].mxu0
        %v897 = vpop.f32.mrb[0].mxu0
        %v898 = vpop.f32.mrb[0].mxu0
        %899 = vdwg.mxu0
        %v900 = vld [vmem:[#allocation2] sm:$0xff]
        %v901 = vadd.f32 %v900, %v895
        %v902 = vxor.u32 %v901, 2147483648
        %v903 = vmul.f32 %v902, 1.442695
        %v904 = vpow.pop %v903
        %v905 = vadd.f32 %v904, 1.0
        %v906 = vrcp.pop %v905
        %v907 = vmul.f32 1.0, %v906
        %909 = vrot.lane.b32.xlu0 %v895, 64
        %v910 = vpop.permute.xlu0 %909
        %v912 = vmul.f32 %v907, %v910
        %914 = vrot.lane.b32.xlu0 %v912, 64
        %v915 = vpop.permute.xlu0 %914
        %v917 = vadd.f32 %v900, %v915
        %v918 = vtanh.pop %v917
        %v919 = vsub.f32 1.0, %v907
        %921 = vrot.lane.b32.xlu0 %v918, 96
        %v922 = vpop.permute.xlu0 %921
        %v924 = vmul.f32 %v919, %v922
        %v925 = vmul.f32 %v907, 0.0
        %v926 = vadd.f32 %v924, %v925
        %v927 = vpack.c.bf16 %v926, %v926
        %929 = vrot.lane.b32.xlu0 %v927, 96
        %v930 = vpop.permute.xlu0 %929
        %v932 = vsel %vm516, %v930, 0
        %934 = vmatprep.subr.bf16.mxu0 0
        %935 = vmatpush1.bf16.msra.mxu0 %v853
        %936 = vmatprep.subr.bf16.mxu0 0
        %937 = vmatpush1.bf16.msra.mxu0 %v854
        %938 = vmatprep.subr.bf16.mxu0 0
        %939 = vmatpush1.bf16.msra.mxu0 0
        %940 = vmatprep.subr.bf16.mxu0 0
        %941 = vmatpush1.bf16.msra.mxu0 0
        %942 = vmatprep.subr.bf16.mxu0 0
        %943 = vmatpush1.bf16.msra.mxu0 0
        %944 = vmatprep.subr.bf16.mxu0 0
        %945 = vmatpush1.bf16.msra.mxu0 0
        %946 = vmatprep.subr.bf16.mxu0 0
        %947 = vmatpush1.bf16.msra.mxu0 0
        %948 = vmatprep.subr.bf16.mxu0 0
        %949 = vmatpush1.bf16.msra.mxu0 0
        %950 = vmatprep.subr.bf16.mxu0 0
        %951 = vmatpush1.bf16.msra.mxu0 0
        %952 = vmatprep.subr.bf16.mxu0 0
        %953 = vmatpush1.bf16.msra.mxu0 0
        %954 = vmatprep.subr.bf16.mxu0 0
        %955 = vmatpush1.bf16.msra.mxu0 0
        %956 = vmatprep.subr.bf16.mxu0 0
        %957 = vmatpush1.bf16.msra.mxu0 0
        %958 = vmatprep.subr.bf16.mxu0 0
        %959 = vmatpush1.bf16.msra.mxu0 0
        %960 = vmatprep.subr.bf16.mxu0 0
        %961 = vmatpush1.bf16.msra.mxu0 0
        %962 = vmatprep.subr.bf16.mxu0 0
        %963 = vmatpush1.bf16.msra.mxu0 0
        %964 = vmatprep.subr.bf16.mxu0 0
        %965 = vmatpush1.bf16.msra.mxu0 0
        %966 = vmatprep.mubr.bf16.mxu0 0
        %967 = vmatmul.mubr.bf16.gmra.mrb[0].mxu0 %v932
        %v968 = vpop.f32.mrb[0].mxu0
        %v969 = vadd.f32 %v843, %v968
        %v970 = vpop.f32.mrb[0].mxu0
        %v971 = vpop.f32.mrb[0].mxu0
        %v972 = vpop.f32.mrb[0].mxu0
        %973 = vdwg.mxu0
        %v974 = vld [vmem:[%s653] sm:$0xff]
        %v975 = vadd.f32 %v974, %v969
        %v976 = vxor.u32 %v975, 2147483648
        %v977 = vmul.f32 %v976, 1.442695
        %v978 = vpow.pop %v977
        %v979 = vadd.f32 %v978, 1.0
        %v980 = vrcp.pop %v979
        %v981 = vmul.f32 1.0, %v980
        %983 = vrot.lane.b32.xlu0 %v969, 64
        %v984 = vpop.permute.xlu0 %983
        %v986 = vmul.f32 %v981, %v984
        %988 = vrot.lane.b32.xlu0 %v986, 64
        %v989 = vpop.permute.xlu0 %988
        %v991 = vadd.f32 %v974, %v989
        %v992 = vtanh.pop %v991
        %v993 = vsub.f32 1.0, %v981
        %995 = vrot.lane.b32.xlu0 %v992, 96
        %v996 = vpop.permute.xlu0 %995
        %v998 = vmul.f32 %v993, %v996
        %v999 = vmul.f32 %v981, %v926
        %v1000 = vadd.f32 %v998, %v999
        %v1001 = vpack.c.bf16 %v1000, %v1000
        %1003 = vrot.lane.b32.xlu0 %v1001, 96
        %v1004 = vpop.permute.xlu0 %1003
        %v1006 = vsel %vm516, %v1004, 0
        %1008 = vmatprep.subr.bf16.mxu0 0
        %1009 = vmatpush1.bf16.msra.mxu0 %v853
        %1010 = vmatprep.subr.bf16.mxu0 0
        %1011 = vmatpush1.bf16.msra.mxu0 %v854
        %1012 = vmatprep.subr.bf16.mxu0 0
        %1013 = vmatpush1.bf16.msra.mxu0 0
        %1014 = vmatprep.subr.bf16.mxu0 0
        %1015 = vmatpush1.bf16.msra.mxu0 0
        %1016 = vmatprep.subr.bf16.mxu0 0
        %1017 = vmatpush1.bf16.msra.mxu0 0
        %1018 = vmatprep.subr.bf16.mxu0 0
        %1019 = vmatpush1.bf16.msra.mxu0 0
        %1020 = vmatprep.subr.bf16.mxu0 0
        %1021 = vmatpush1.bf16.msra.mxu0 0
        %1022 = vmatprep.subr.bf16.mxu0 0
        %1023 = vmatpush1.bf16.msra.mxu0 0
        %1024 = vmatprep.subr.bf16.mxu0 0
        %1025 = vmatpush1.bf16.msra.mxu0 0
        %1026 = vmatprep.subr.bf16.mxu0 0
        %1027 = vmatpush1.bf16.msra.mxu0 0
        %1028 = vmatprep.subr.bf16.mxu0 0
        %1029 = vmatpush1.bf16.msra.mxu0 0
        %1030 = vmatprep.subr.bf16.mxu0 0
        %1031 = vmatpush1.bf16.msra.mxu0 0
        %1032 = vmatprep.subr.bf16.mxu0 0
        %1033 = vmatpush1.bf16.msra.mxu0 0
        %1034 = vmatprep.subr.bf16.mxu0 0
        %1035 = vmatpush1.bf16.msra.mxu0 0
        %1036 = vmatprep.subr.bf16.mxu0 0
        %1037 = vmatpush1.bf16.msra.mxu0 0
        %1038 = vmatprep.subr.bf16.mxu0 0
        %1039 = vmatpush1.bf16.msra.mxu0 0
        %1040 = vmatprep.mubr.bf16.mxu0 0
        %1041 = vmatmul.mubr.bf16.gmra.mrb[0].mxu0 %v1006
        %v1042 = vpop.f32.mrb[0].mxu0
        %v1043 = vadd.f32 %v843, %v1042
        %v1044 = vpop.f32.mrb[0].mxu0
        %v1045 = vpop.f32.mrb[0].mxu0
        %v1046 = vpop.f32.mrb[0].mxu0
        %1047 = vdwg.mxu0
        %v1048 = vld [vmem:[%s745] sm:$0xff]
        %v1049 = vadd.f32 %v1048, %v1043
        %v1050 = vxor.u32 %v1049, 2147483648
        %v1051 = vmul.f32 %v1050, 1.442695
        %v1052 = vpow.pop %v1051
        %v1053 = vadd.f32 %v1052, 1.0
        %v1054 = vrcp.pop %v1053
        %v1055 = vmul.f32 1.0, %v1054
        %1057 = vrot.lane.b32.xlu0 %v1043, 64
        %v1058 = vpop.permute.xlu0 %1057
        %v1060 = vmul.f32 %v1055, %v1058
        %1062 = vrot.lane.b32.xlu0 %v1060, 64
        %v1063 = vpop.permute.xlu0 %1062
        %v1065 = vadd.f32 %v1048, %v1063
        %v1066 = vtanh.pop %v1065
        %v1067 = vsub.f32 1.0, %v1055
        %1069 = vrot.lane.b32.xlu0 %v1066, 96
        %v1070 = vpop.permute.xlu0 %1069
        %v1072 = vmul.f32 %v1067, %v1070
        %v1073 = vmul.f32 %v1055, %v1000
        %v1074 = vadd.f32 %v1072, %v1073
        %v1075 = vpack.c.bf16 %v1074, %v1074
        %1077 = vrot.lane.b32.xlu0 %v1075, 96
        %v1078 = vpop.permute.xlu0 %1077
        %v1080 = vsel %vm516, %v1078, 0
        %1082 = vmatprep.subr.bf16.mxu0 0
        %1083 = vmatpush1.bf16.msra.mxu0 %v853
        %1084 = vmatprep.subr.bf16.mxu0 0
        %1085 = vmatpush1.bf16.msra.mxu0 %v854
        %1086 = vmatprep.subr.bf16.mxu0 0
        %1087 = vmatpush1.bf16.msra.mxu0 0
        %1088 = vmatprep.subr.bf16.mxu0 0
        %1089 = vmatpush1.bf16.msra.mxu0 0
        %1090 = vmatprep.subr.bf16.mxu0 0
        %1091 = vmatpush1.bf16.msra.mxu0 0
        %1092 = vmatprep.subr.bf16.mxu0 0
        %1093 = vmatpush1.bf16.msra.mxu0 0
        %1094 = vmatprep.subr.bf16.mxu0 0
        %1095 = vmatpush1.bf16.msra.mxu0 0
        %1096 = vmatprep.subr.bf16.mxu0 0
        %1097 = vmatpush1.bf16.msra.mxu0 0
        %1098 = vmatprep.subr.bf16.mxu0 0
        %1099 = vmatpush1.bf16.msra.mxu0 0
        %1100 = vmatprep.subr.bf16.mxu0 0
        %1101 = vmatpush1.bf16.msra.mxu0 0
        %1102 = vmatprep.subr.bf16.mxu0 0
        %1103 = vmatpush1.bf16.msra.mxu0 0
        %1104 = vmatprep.subr.bf16.mxu0 0
        %1105 = vmatpush1.bf16.msra.mxu0 0
        %1106 = vmatprep.subr.bf16.mxu0 0
        %1107 = vmatpush1.bf16.msra.mxu0 0
        %1108 = vmatprep.subr.bf16.mxu0 0
        %1109 = vmatpush1.bf16.msra.mxu0 0
        %1110 = vmatprep.subr.bf16.mxu0 0
        %1111 = vmatpush1.bf16.msra.mxu0 0
        %1112 = vmatprep.subr.bf16.mxu0 0
        %1113 = vmatpush1.bf16.msra.mxu0 0
        %1114 = vmatprep.mubr.bf16.mxu0 0
        %1115 = vmatmul.mubr.bf16.gmra.mrb[0].mxu0 %v1080
        %v1116 = vpop.f32.mrb[0].mxu0
        %v1117 = vadd.f32 %v843, %v1116
        %v1118 = vpop.f32.mrb[0].mxu0
        %v1119 = vpop.f32.mrb[0].mxu0
        %v1120 = vpop.f32.mrb[0].mxu0
        %1121 = vdwg.mxu0
        %v1122 = vld [vmem:[%s837] sm:$0xff]
        %v1123 = vadd.f32 %v1122, %v1117
        %v1124 = vxor.u32 %v1123, 2147483648
        %v1125 = vmul.f32 %v1124, 1.442695
        %v1126 = vpow.pop %v1125
        %v1127 = vadd.f32 %v1126, 1.0
        %v1128 = vrcp.pop %v1127
        %v1129 = vmul.f32 1.0, %v1128
        %1131 = vrot.lane.b32.xlu0 %v1117, 64
        %v1132 = vpop.permute.xlu0 %1131
        %v1134 = vmul.f32 %v1129, %v1132
        %1136 = vrot.lane.b32.xlu0 %v1134, 64
        %v1137 = vpop.permute.xlu0 %1136
        %v1139 = vadd.f32 %v1122, %v1137
        %v1140 = vtanh.pop %v1139
        %v1141 = vsub.f32 1.0, %v1129
        %1143 = vrot.lane.b32.xlu0 %v1140, 96
        %v1144 = vpop.permute.xlu0 %1143
        %v1146 = vmul.f32 %v1141, %v1144
        %v1147 = vmul.f32 %v1129, %v1074
        %v1148 = vadd.f32 %v1146, %v1147
        %v1149 = vld [vmem:[#allocation3] sm:$0xff]
        %v1150 = vld [vmem:[%s8] sm:$0xf]
        %v1151 = vld [vmem:[%s8 + $0x4] sm:$0xf]
        %v1152 = vld [vmem:[%s8 + $0x8] sm:$0xf]
        %v1153 = vld [vmem:[%s8 + $0xc] sm:$0xf]
        %v1154 = vld [vmem:[%s9] sm:$0x1]
        %v1155 = vpack.c.bf16 %v1148, %v1148
        %1157 = vrot.lane.b32.xlu0 %v1155, 96
        %v1158 = vpop.permute.xlu0 %1157
        %v1160 = vsel %vm516, %v1158, 0
        %1162 = vmatprep.subr.bf16.mxu0 0
        %1163 = vmatpush1.bf16.msra.mxu0 %v853
        %1164 = vmatprep.subr.bf16.mxu0 0
        %1165 = vmatpush1.bf16.msra.mxu0 %v854
        %1166 = vmatprep.subr.bf16.mxu0 0
        %1167 = vmatpush1.bf16.msra.mxu0 0
        %1168 = vmatprep.subr.bf16.mxu0 0
        %1169 = vmatpush1.bf16.msra.mxu0 0
        %1170 = vmatprep.subr.bf16.mxu0 0
        %1171 = vmatpush1.bf16.msra.mxu0 0
        %1172 = vmatprep.subr.bf16.mxu0 0
        %1173 = vmatpush1.bf16.msra.mxu0 0
        %1174 = vmatprep.subr.bf16.mxu0 0
        %1175 = vmatpush1.bf16.msra.mxu0 0
        %1176 = vmatprep.subr.bf16.mxu0 0
        %1177 = vmatpush1.bf16.msra.mxu0 0
        %1178 = vmatprep.subr.bf16.mxu0 0
        %1179 = vmatpush1.bf16.msra.mxu0 0
        %1180 = vmatprep.subr.bf16.mxu0 0
        %1181 = vmatpush1.bf16.msra.mxu0 0
        %1182 = vmatprep.subr.bf16.mxu0 0
        %1183 = vmatpush1.bf16.msra.mxu0 0
        %1184 = vmatprep.subr.bf16.mxu0 0
        %1185 = vmatpush1.bf16.msra.mxu0 0
        %1186 = vmatprep.subr.bf16.mxu0 0
        %1187 = vmatpush1.bf16.msra.mxu0 0
        %1188 = vmatprep.subr.bf16.mxu0 0
        %1189 = vmatpush1.bf16.msra.mxu0 0
        %1190 = vmatprep.subr.bf16.mxu0 0
        %1191 = vmatpush1.bf16.msra.mxu0 0
        %1192 = vmatprep.subr.bf16.mxu0 0
        %1193 = vmatpush1.bf16.msra.mxu0 0
        %1194 = vmatprep.mubr.bf16.mxu0 0
        %1195 = vmatmul.mubr.bf16.gmra.mrb[0].mxu0 %v1160
        %v1196 = vpop.f32.mrb[0].mxu0
        %v1197 = vadd.f32 %v843, %v1196
        %v1198 = vpop.f32.mrb[0].mxu0
        %v1199 = vpop.f32.mrb[0].mxu0
        %v1200 = vpop.f32.mrb[0].mxu0
        %1201 = vdwg.mxu0
        %v1202 = vpack.c.bf16 %v1149, %v1149
        %v1204 = vsel %vm516, %v1202, 0
        %1206 = vmatprep.subr.bf16.mxu0 0
        %1207 = vmatpush1.bf16.msra.mxu0 %v512
        %1208 = vmatprep.subr.bf16.mxu0 0
        %1209 = vmatpush1.bf16.msra.mxu0 %v513
        %1210 = vmatprep.subr.bf16.mxu0 0
        %1211 = vmatpush1.bf16.msra.mxu0 0
        %1212 = vmatprep.subr.bf16.mxu0 0
        %1213 = vmatpush1.bf16.msra.mxu0 0
        %1214 = vmatprep.subr.bf16.mxu0 0
        %1215 = vmatpush1.bf16.msra.mxu0 0
        %1216 = vmatprep.subr.bf16.mxu0 0
        %1217 = vmatpush1.bf16.msra.mxu0 0
        %1218 = vmatprep.subr.bf16.mxu0 0
        %1219 = vmatpush1.bf16.msra.mxu0 0
        %1220 = vmatprep.subr.bf16.mxu0 0
        %1221 = vmatpush1.bf16.msra.mxu0 0
        %1222 = vmatprep.subr.bf16.mxu0 0
        %1223 = vmatpush1.bf16.msra.mxu0 0
        %1224 = vmatprep.subr.bf16.mxu0 0
        %1225 = vmatpush1.bf16.msra.mxu0 0
        %1226 = vmatprep.subr.bf16.mxu0 0
        %1227 = vmatpush1.bf16.msra.mxu0 0
        %1228 = vmatprep.subr.bf16.mxu0 0
        %1229 = vmatpush1.bf16.msra.mxu0 0
        %1230 = vmatprep.subr.bf16.mxu0 0
        %1231 = vmatpush1.bf16.msra.mxu0 0
        %1232 = vmatprep.subr.bf16.mxu0 0
        %1233 = vmatpush1.bf16.msra.mxu0 0
        %1234 = vmatprep.subr.bf16.mxu0 0
        %1235 = vmatpush1.bf16.msra.mxu0 0
        %1236 = vmatprep.subr.bf16.mxu0 0
        %1237 = vmatpush1.bf16.msra.mxu0 0
        %1238 = vmatprep.mubr.bf16.mxu0 0
        %1239 = vmatmul.mubr.bf16.gmra.mrb[0].mxu0 %v1204
        %v1240 = vpop.f32.mrb[0].mxu0
        %v1241 = vadd.f32 %v502, %v1240
        %v1242 = vpop.f32.mrb[0].mxu0
        %v1243 = vpop.f32.mrb[0].mxu0
        %v1244 = vpop.f32.mrb[0].mxu0
        %1245 = vdwg.mxu0
        %v1246 = vadd.f32 %v1241, %v1197
        %v1247 = vxor.u32 %v1246, 2147483648
        %v1248 = vmul.f32 %v1247, 1.442695
        %v1249 = vpow.pop %v1248
        %v1250 = vadd.f32 %v1249, 1.0
        %v1251 = vrcp.pop %v1250
        %v1252 = vmul.f32 1.0, %v1251
        %1254 = vrot.lane.b32.xlu0 %v1197, 64
        %v1255 = vpop.permute.xlu0 %1254
        %v1257 = vmul.f32 %v1252, %v1255
        %1259 = vrot.lane.b32.xlu0 %v1257, 64
        %v1260 = vpop.permute.xlu0 %1259
        %v1262 = vadd.f32 %v1241, %v1260
        %v1263 = vtanh.pop %v1262
        %v1264 = vsub.f32 1.0, %v1252
        %1266 = vrot.lane.b32.xlu0 %v1263, 96
        %v1267 = vpop.permute.xlu0 %1266
        %v1269 = vmul.f32 %v1264, %v1267
        %v1270 = vmul.f32 %v1252, %v1148
        %v1271 = vadd.f32 %v1269, %v1270
        %v1272 = vpack.c.bf16 %v1271, %v1271
        %v1274 = vlaneseq
        %v1275 = vshrl.u32 %v1274, 7
        %v1276 = vsub.s32 0, %v1275
        %v1277 = vrot.slane %v1154, %v1276
        %1280 = vrot.lane.b32.xlu0 %v1272, 96
        %v1281 = vpop.permute.xlu0 %1280
        %v1286 = vunpack.c.l.b16 %v1150
        %v1287 = vunpack.c.l.b16 %v1151
        %v1288 = vunpack.c.l.b16 %v1152
        %v1289 = vunpack.c.l.b16 %v1153
        %v1290 = vpack.c.b16 %v1287, %v1286
        %v1291 = vpack.c.b16 %v1289, %v1288
        %v1295 = vsel %vm516, %v1281, 0
        %1297 = vmatprep.subr.bf16.mxu0 0
        %1298 = vmatpush1.bf16.msra.mxu0 %v1290
        %1299 = vmatprep.subr.bf16.mxu0 0
        %1300 = vmatpush1.bf16.msra.mxu0 %v1291
        %1301 = vmatprep.subr.bf16.mxu0 0
        %1302 = vmatpush1.bf16.msra.mxu0 0
        %1303 = vmatprep.subr.bf16.mxu0 0
        %1304 = vmatpush1.bf16.msra.mxu0 0
        %1305 = vmatprep.subr.bf16.mxu0 0
        %1306 = vmatpush1.bf16.msra.mxu0 0
        %1307 = vmatprep.subr.bf16.mxu0 0
        %1308 = vmatpush1.bf16.msra.mxu0 0
        %1309 = vmatprep.subr.bf16.mxu0 0
        %1310 = vmatpush1.bf16.msra.mxu0 0
        %1311 = vmatprep.subr.bf16.mxu0 0
        %1312 = vmatpush1.bf16.msra.mxu0 0
        %1313 = vmatprep.subr.bf16.mxu0 0
        %1314 = vmatpush1.bf16.msra.mxu0 0
        %1315 = vmatprep.subr.bf16.mxu0 0
        %1316 = vmatpush1.bf16.msra.mxu0 0
        %1317 = vmatprep.subr.bf16.mxu0 0
        %1318 = vmatpush1.bf16.msra.mxu0 0
        %1319 = vmatprep.subr.bf16.mxu0 0
        %1320 = vmatpush1.bf16.msra.mxu0 0
        %1321 = vmatprep.subr.bf16.mxu0 0
        %1322 = vmatpush1.bf16.msra.mxu0 0
        %1323 = vmatprep.subr.bf16.mxu0 0
        %1324 = vmatpush1.bf16.msra.mxu0 0
        %1325 = vmatprep.subr.bf16.mxu0 0
        %1326 = vmatpush1.bf16.msra.mxu0 0
        %1327 = vmatprep.subr.bf16.mxu0 0
        %1328 = vmatpush1.bf16.msra.mxu0 0
        %1329 = vmatprep.mubr.bf16.mxu0 0
        %1330 = vmatmul.mubr.bf16.gmra.mrb[0].mxu0 %v1295
        %v1331 = vpop.f32.mrb[0].mxu0
        %v1332 = vadd.f32 %v1277, %v1331
        %v1333 = vpop.f32.mrb[0].mxu0
        %v1334 = vpop.f32.mrb[0].mxu0
        %v1335 = vpop.f32.mrb[0].mxu0
        %1336 = vdwg.mxu0
        %1338 = vrot.lane.b32.xlu0 %v1202, 96
        %v1339 = vpop.permute.xlu0 %1338
        %v1341 = vsel %vm516, %v1339, 0
        %1343 = vmatprep.subr.bf16.mxu0 0
        %1344 = vmatpush1.bf16.msra.mxu0 %v512
        %1345 = vmatprep.subr.bf16.mxu0 0
        %1346 = vmatpush1.bf16.msra.mxu0 %v513
        %1347 = vmatprep.subr.bf16.mxu0 0
        %1348 = vmatpush1.bf16.msra.mxu0 0
        %1349 = vmatprep.subr.bf16.mxu0 0
        %1350 = vmatpush1.bf16.msra.mxu0 0
        %1351 = vmatprep.subr.bf16.mxu0 0
        %1352 = vmatpush1.bf16.msra.mxu0 0
        %1353 = vmatprep.subr.bf16.mxu0 0
        %1354 = vmatpush1.bf16.msra.mxu0 0
        %1355 = vmatprep.subr.bf16.mxu0 0
        %1356 = vmatpush1.bf16.msra.mxu0 0
        %1357 = vmatprep.subr.bf16.mxu0 0
        %1358 = vmatpush1.bf16.msra.mxu0 0
        %1359 = vmatprep.subr.bf16.mxu0 0
        %1360 = vmatpush1.bf16.msra.mxu0 0
        %1361 = vmatprep.subr.bf16.mxu0 0
        %1362 = vmatpush1.bf16.msra.mxu0 0
        %1363 = vmatprep.subr.bf16.mxu0 0
        %1364 = vmatpush1.bf16.msra.mxu0 0
        %1365 = vmatprep.subr.bf16.mxu0 0
        %1366 = vmatpush1.bf16.msra.mxu0 0
        %1367 = vmatprep.subr.bf16.mxu0 0
        %1368 = vmatpush1.bf16.msra.mxu0 0
        %1369 = vmatprep.subr.bf16.mxu0 0
        %1370 = vmatpush1.bf16.msra.mxu0 0
        %1371 = vmatprep.subr.bf16.mxu0 0
        %1372 = vmatpush1.bf16.msra.mxu0 0
        %1373 = vmatprep.subr.bf16.mxu0 0
        %1374 = vmatpush1.bf16.msra.mxu0 0
        %1375 = vmatprep.mubr.bf16.mxu0 0
        %1376 = vmatmul.mubr.bf16.gmra.mrb[0].mxu0 %v1341
        %v1377 = vpop.f32.mrb[0].mxu0
        %v1378 = vadd.f32 %v502, %v1377
        %v1379 = vpop.f32.mrb[0].mxu0
        %v1380 = vpop.f32.mrb[0].mxu0
        %v1381 = vpop.f32.mrb[0].mxu0
        %1382 = vdwg.mxu0
        %v1383 = vadd.f32 %v1378, %v1197
        %v1384 = vxor.u32 %v1383, 2147483648
        %v1385 = vmul.f32 %v1384, 1.442695
        %v1386 = vpow.pop %v1385
        %v1387 = vadd.f32 %v1386, 1.0
        %v1388 = vrcp.pop %v1387
        %v1389 = vmul.f32 1.0, %v1388
        %v1390 = vmul.f32 %v1389, %v1255
        %1392 = vrot.lane.b32.xlu0 %v1390, 64
        %v1393 = vpop.permute.xlu0 %1392
        %v1395 = vadd.f32 %v1378, %v1393
        %v1396 = vtanh.pop %v1395
        %v1397 = vsub.f32 1.0, %v1389
        %1399 = vrot.lane.b32.xlu0 %v1396, 96
        %v1400 = vpop.permute.xlu0 %1399
        %v1402 = vmul.f32 %v1397, %v1400
        %v1403 = vmul.f32 %v1389, %v1148
        %v1404 = vadd.f32 %v1402, %v1403
        %v1405 = vpack.c.bf16 %v1404, %v1404
        %1407 = vrot.lane.b32.xlu0 %v1405, 96
        %v1408 = vpop.permute.xlu0 %1407
        %v1410 = vsel %vm516, %v1408, 0
        %1412 = vmatprep.subr.bf16.mxu0 0
        %1413 = vmatpush1.bf16.msra.mxu0 %v1290
        %1414 = vmatprep.subr.bf16.mxu0 0
        %1415 = vmatpush1.bf16.msra.mxu0 %v1291
        %1416 = vmatprep.subr.bf16.mxu0 0
        %1417 = vmatpush1.bf16.msra.mxu0 0
        %1418 = vmatprep.subr.bf16.mxu0 0
        %1419 = vmatpush1.bf16.msra.mxu0 0
        %1420 = vmatprep.subr.bf16.mxu0 0
        %1421 = vmatpush1.bf16.msra.mxu0 0
        %1422 = vmatprep.subr.bf16.mxu0 0
        %1423 = vmatpush1.bf16.msra.mxu0 0
        %1424 = vmatprep.subr.bf16.mxu0 0
        %1425 = vmatpush1.bf16.msra.mxu0 0
        %1426 = vmatprep.subr.bf16.mxu0 0
        %1427 = vmatpush1.bf16.msra.mxu0 0
        %1428 = vmatprep.subr.bf16.mxu0 0
        %1429 = vmatpush1.bf16.msra.mxu0 0
        %1430 = vmatprep.subr.bf16.mxu0 0
        %1431 = vmatpush1.bf16.msra.mxu0 0
        %1432 = vmatprep.subr.bf16.mxu0 0
        %1433 = vmatpush1.bf16.msra.mxu0 0
        %1434 = vmatprep.subr.bf16.mxu0 0
        %1435 = vmatpush1.bf16.msra.mxu0 0
        %1436 = vmatprep.subr.bf16.mxu0 0
        %1437 = vmatpush1.bf16.msra.mxu0 0
        %1438 = vmatprep.subr.bf16.mxu0 0
        %1439 = vmatpush1.bf16.msra.mxu0 0
        %1440 = vmatprep.subr.bf16.mxu0 0
        %1441 = vmatpush1.bf16.msra.mxu0 0
        %1442 = vmatprep.subr.bf16.mxu0 0
        %1443 = vmatpush1.bf16.msra.mxu0 0
        %1444 = vmatprep.mubr.bf16.mxu0 0
        %1445 = vmatmul.mubr.bf16.gmra.mrb[0].mxu0 %v1410
        %v1446 = vpop.f32.mrb[0].mxu0
        %v1447 = vadd.f32 %v1277, %v1446
        %v1448 = vpop.f32.mrb[0].mxu0
        %v1449 = vpop.f32.mrb[0].mxu0
        %v1450 = vpop.f32.mrb[0].mxu0
        %1451 = vdwg.mxu0
        %1452 = vrot.lane.b32.xlu0 %v1202, 64
        %v1453 = vpop.permute.xlu0 %1452
        %v1455 = vsel %vm516, %v1453, 0
        %1457 = vmatprep.subr.bf16.mxu0 0
        %1458 = vmatpush1.bf16.msra.mxu0 %v512
        %1459 = vmatprep.subr.bf16.mxu0 0
        %1460 = vmatpush1.bf16.msra.mxu0 %v513
        %1461 = vmatprep.subr.bf16.mxu0 0
        %1462 = vmatpush1.bf16.msra.mxu0 0
        %1463 = vmatprep.subr.bf16.mxu0 0
        %1464 = vmatpush1.bf16.msra.mxu0 0
        %1465 = vmatprep.subr.bf16.mxu0 0
        %1466 = vmatpush1.bf16.msra.mxu0 0
        %1467 = vmatprep.subr.bf16.mxu0 0
        %1468 = vmatpush1.bf16.msra.mxu0 0
        %1469 = vmatprep.subr.bf16.mxu0 0
        %1470 = vmatpush1.bf16.msra.mxu0 0
        %1471 = vmatprep.subr.bf16.mxu0 0
        %1472 = vmatpush1.bf16.msra.mxu0 0
        %1473 = vmatprep.subr.bf16.mxu0 0
        %1474 = vmatpush1.bf16.msra.mxu0 0
        %1475 = vmatprep.subr.bf16.mxu0 0
        %1476 = vmatpush1.bf16.msra.mxu0 0
        %1477 = vmatprep.subr.bf16.mxu0 0
        %1478 = vmatpush1.bf16.msra.mxu0 0
        %1479 = vmatprep.subr.bf16.mxu0 0
        %1480 = vmatpush1.bf16.msra.mxu0 0
        %1481 = vmatprep.subr.bf16.mxu0 0
        %1482 = vmatpush1.bf16.msra.mxu0 0
        %1483 = vmatprep.subr.bf16.mxu0 0
        %1484 = vmatpush1.bf16.msra.mxu0 0
        %1485 = vmatprep.subr.bf16.mxu0 0
        %1486 = vmatpush1.bf16.msra.mxu0 0
        %1487 = vmatprep.subr.bf16.mxu0 0
        %1488 = vmatpush1.bf16.msra.mxu0 0
        %1489 = vmatprep.mubr.bf16.mxu0 0
        %1490 = vmatmul.mubr.bf16.gmra.mrb[0].mxu0 %v1455
        %v1491 = vpop.f32.mrb[0].mxu0
        %v1492 = vadd.f32 %v502, %v1491
        %v1493 = vpop.f32.mrb[0].mxu0
        %v1494 = vpop.f32.mrb[0].mxu0
        %v1495 = vpop.f32.mrb[0].mxu0
        %1496 = vdwg.mxu0
        %v1497 = vadd.f32 %v1492, %v1197
        %v1498 = vxor.u32 %v1497, 2147483648
        %v1499 = vmul.f32 %v1498, 1.442695
        %v1500 = vpow.pop %v1499
        %v1501 = vadd.f32 %v1500, 1.0
        %v1502 = vrcp.pop %v1501
        %v1503 = vmul.f32 1.0, %v1502
        %v1504 = vmul.f32 %v1503, %v1255
        %1506 = vrot.lane.b32.xlu0 %v1504, 64
        %v1507 = vpop.permute.xlu0 %1506
        %v1509 = vadd.f32 %v1492, %v1507
        %v1510 = vtanh.pop %v1509
        %v1511 = vsub.f32 1.0, %v1503
        %1513 = vrot.lane.b32.xlu0 %v1510, 96
        %v1514 = vpop.permute.xlu0 %1513
        %v1516 = vmul.f32 %v1511, %v1514
        %v1517 = vmul.f32 %v1503, %v1148
        %v1518 = vadd.f32 %v1516, %v1517
        %v1519 = vpack.c.bf16 %v1518, %v1518
        %1521 = vrot.lane.b32.xlu0 %v1519, 96
        %v1522 = vpop.permute.xlu0 %1521
        %v1524 = vsel %vm516, %v1522, 0
        %1526 = vmatprep.subr.bf16.mxu0 0
        %1527 = vmatpush1.bf16.msra.mxu0 %v1290
        %1528 = vmatprep.subr.bf16.mxu0 0
        %1529 = vmatpush1.bf16.msra.mxu0 %v1291
        %1530 = vmatprep.subr.bf16.mxu0 0
        %1531 = vmatpush1.bf16.msra.mxu0 0
        %1532 = vmatprep.subr.bf16.mxu0 0
        %1533 = vmatpush1.bf16.msra.mxu0 0
        %1534 = vmatprep.subr.bf16.mxu0 0
        %1535 = vmatpush1.bf16.msra.mxu0 0
        %1536 = vmatprep.subr.bf16.mxu0 0
        %1537 = vmatpush1.bf16.msra.mxu0 0
        %1538 = vmatprep.subr.bf16.mxu0 0
        %1539 = vmatpush1.bf16.msra.mxu0 0
        %1540 = vmatprep.subr.bf16.mxu0 0
        %1541 = vmatpush1.bf16.msra.mxu0 0
        %1542 = vmatprep.subr.bf16.mxu0 0
        %1543 = vmatpush1.bf16.msra.mxu0 0
        %1544 = vmatprep.subr.bf16.mxu0 0
        %1545 = vmatpush1.bf16.msra.mxu0 0
        %1546 = vmatprep.subr.bf16.mxu0 0
        %1547 = vmatpush1.bf16.msra.mxu0 0
        %1548 = vmatprep.subr.bf16.mxu0 0
        %1549 = vmatpush1.bf16.msra.mxu0 0
        %1550 = vmatprep.subr.bf16.mxu0 0
        %1551 = vmatpush1.bf16.msra.mxu0 0
        %1552 = vmatprep.subr.bf16.mxu0 0
        %1553 = vmatpush1.bf16.msra.mxu0 0
        %1554 = vmatprep.subr.bf16.mxu0 0
        %1555 = vmatpush1.bf16.msra.mxu0 0
        %1556 = vmatprep.subr.bf16.mxu0 0
        %1557 = vmatpush1.bf16.msra.mxu0 0
        %1558 = vmatprep.mubr.bf16.mxu0 0
        %1559 = vmatmul.mubr.bf16.gmra.mrb[0].mxu0 %v1524
        %v1560 = vpop.f32.mrb[0].mxu0
        %v1561 = vadd.f32 %v1277, %v1560
        %v1562 = vpop.f32.mrb[0].mxu0
        %v1563 = vpop.f32.mrb[0].mxu0
        %v1564 = vpop.f32.mrb[0].mxu0
        %1565 = vdwg.mxu0
        %1566 = vrot.lane.b32.xlu0 %v1202, 32
        %v1567 = vpop.permute.xlu0 %1566
        %v1569 = vsel %vm516, %v1567, 0
        %1571 = vmatprep.subr.bf16.mxu0 0
        %1572 = vmatpush1.bf16.msra.mxu0 %v512
        %1573 = vmatprep.subr.bf16.mxu0 0
        %1574 = vmatpush1.bf16.msra.mxu0 %v513
        %1575 = vmatprep.subr.bf16.mxu0 0
        %1576 = vmatpush1.bf16.msra.mxu0 0
        %1577 = vmatprep.subr.bf16.mxu0 0
        %1578 = vmatpush1.bf16.msra.mxu0 0
        %1579 = vmatprep.subr.bf16.mxu0 0
        %1580 = vmatpush1.bf16.msra.mxu0 0
        %1581 = vmatprep.subr.bf16.mxu0 0
        %1582 = vmatpush1.bf16.msra.mxu0 0
        %1583 = vmatprep.subr.bf16.mxu0 0
        %1584 = vmatpush1.bf16.msra.mxu0 0
        %1585 = vmatprep.subr.bf16.mxu0 0
        %1586 = vmatpush1.bf16.msra.mxu0 0
        %1587 = vmatprep.subr.bf16.mxu0 0
        %1588 = vmatpush1.bf16.msra.mxu0 0
        %1589 = vmatprep.subr.bf16.mxu0 0
        %1590 = vmatpush1.bf16.msra.mxu0 0
        %1591 = vmatprep.subr.bf16.mxu0 0
        %1592 = vmatpush1.bf16.msra.mxu0 0
        %1593 = vmatprep.subr.bf16.mxu0 0
        %1594 = vmatpush1.bf16.msra.mxu0 0
        %1595 = vmatprep.subr.bf16.mxu0 0
        %1596 = vmatpush1.bf16.msra.mxu0 0
        %1597 = vmatprep.subr.bf16.mxu0 0
        %1598 = vmatpush1.bf16.msra.mxu0 0
        %1599 = vmatprep.subr.bf16.mxu0 0
        %1600 = vmatpush1.bf16.msra.mxu0 0
        %1601 = vmatprep.subr.bf16.mxu0 0
        %1602 = vmatpush1.bf16.msra.mxu0 0
        %1603 = vmatprep.mubr.bf16.mxu0 0
        %1604 = vmatmul.mubr.bf16.gmra.mrb[0].mxu0 %v1569
        %v1605 = vpop.f32.mrb[0].mxu0
        %v1606 = vadd.f32 %v502, %v1605
        %v1607 = vpop.f32.mrb[0].mxu0
        %v1608 = vpop.f32.mrb[0].mxu0
        %v1609 = vpop.f32.mrb[0].mxu0
        %1610 = vdwg.mxu0
        %v1611 = vadd.f32 %v1606, %v1197
        %v1612 = vxor.u32 %v1611, 2147483648
        %v1613 = vmul.f32 %v1612, 1.442695
        %v1614 = vpow.pop %v1613
        %v1615 = vadd.f32 %v1614, 1.0
        %v1616 = vrcp.pop %v1615
        %v1617 = vmul.f32 1.0, %v1616
        %v1618 = vmul.f32 %v1617, %v1255
        %1620 = vrot.lane.b32.xlu0 %v1618, 64
        %v1621 = vpop.permute.xlu0 %1620
        %v1623 = vadd.f32 %v1606, %v1621
        %v1624 = vtanh.pop %v1623
        %v1625 = vsub.f32 1.0, %v1617
        %1627 = vrot.lane.b32.xlu0 %v1624, 96
        %v1628 = vpop.permute.xlu0 %1627
        %v1630 = vmul.f32 %v1625, %v1628
        %v1631 = vmul.f32 %v1617, %v1148
        %v1632 = vadd.f32 %v1630, %v1631
        %v1633 = vpack.c.bf16 %v1632, %v1632
        %1635 = vrot.lane.b32.xlu0 %v1633, 96
        %v1636 = vpop.permute.xlu0 %1635
        %v1638 = vsel %vm516, %v1636, 0
        %1640 = vmatprep.subr.bf16.mxu0 0
        %1641 = vmatpush1.bf16.msra.mxu0 %v1290
        %1642 = vmatprep.subr.bf16.mxu0 0
        %1643 = vmatpush1.bf16.msra.mxu0 %v1291
        %1644 = vmatprep.subr.bf16.mxu0 0
        %1645 = vmatpush1.bf16.msra.mxu0 0
        %1646 = vmatprep.subr.bf16.mxu0 0
        %1647 = vmatpush1.bf16.msra.mxu0 0
        %1648 = vmatprep.subr.bf16.mxu0 0
        %1649 = vmatpush1.bf16.msra.mxu0 0
        %1650 = vmatprep.subr.bf16.mxu0 0
        %1651 = vmatpush1.bf16.msra.mxu0 0
        %1652 = vmatprep.subr.bf16.mxu0 0
        %1653 = vmatpush1.bf16.msra.mxu0 0
        %1654 = vmatprep.subr.bf16.mxu0 0
        %1655 = vmatpush1.bf16.msra.mxu0 0
        %1656 = vmatprep.subr.bf16.mxu0 0
        %1657 = vmatpush1.bf16.msra.mxu0 0
        %1658 = vmatprep.subr.bf16.mxu0 0
        %1659 = vmatpush1.bf16.msra.mxu0 0
        %1660 = vmatprep.subr.bf16.mxu0 0
        %1661 = vmatpush1.bf16.msra.mxu0 0
        %1662 = vmatprep.subr.bf16.mxu0 0
        %1663 = vmatpush1.bf16.msra.mxu0 0
        %1664 = vmatprep.subr.bf16.mxu0 0
        %1665 = vmatpush1.bf16.msra.mxu0 0
        %1666 = vmatprep.subr.bf16.mxu0 0
        %1667 = vmatpush1.bf16.msra.mxu0 0
        %1668 = vmatprep.subr.bf16.mxu0 0
        %1669 = vmatpush1.bf16.msra.mxu0 0
        %1670 = vmatprep.subr.bf16.mxu0 0
        %1671 = vmatpush1.bf16.msra.mxu0 0
        %1672 = vmatprep.mubr.bf16.mxu0 0
        %1673 = vmatmul.mubr.bf16.gmra.mrb[0].mxu0 %v1638
        %v1674 = vpop.f32.mrb[0].mxu0
        %v1675 = vadd.f32 %v1277, %v1674
        %v1676 = vpop.f32.mrb[0].mxu0
        %v1677 = vpop.f32.mrb[0].mxu0
        %v1678 = vpop.f32.mrb[0].mxu0
        %1679 = vdwg.mxu0
        %1681 = vrot.lane.b32.xlu0 %v1447, 4
        %v1682 = vpop.permute.xlu0 %1681
        %1685 = vrot.lane.b32.xlu0 %v1561, 8
        %v1686 = vpop.permute.xlu0 %1685
        %1689 = vrot.lane.b32.xlu0 %v1675, 12
        %v1690 = vpop.permute.xlu0 %1689
        %v1692 = vsel %vm448, %v1332, %v1682
        %vm1693 = vcmask 64512
        %v1694 = vsel %vm1693, %v1692, %v1686
        %vm1695 = vcmask 97280
        %v1696 = vsel %vm1695, %v1694, %v1690
        %vm1697 = vcmask 130048
        %1698 = vst.msk [vmem:[%s419] sm:$0xff] %vm1697, %v1696
        %s1699 = sand.u32 %s270, 1
        %s1700 = scalar_lea.sflag [#allocation5], %s1699
        %s1701 = sand.u32 %s270, 1
        %s1702 = smul.addr %s1701, 8
        %s1703 = scalar_lea.vmem [#allocation9], %s1702
        // Predicated region
        $region73: #{tpu_custom_call.1} parent=59 // pred_check
          %p1704 = pneg %p280
        $region74: #{tpu_custom_call.1} parent=59 // pred_check_branch
          %1706 = sbr.rel (%p1704) target = $region76
        $region75: #{tpu_custom_call.1} parent=59 // pred_region
          %s1708 = ssub.s32 128, 128
          %1709 = vsyncadd %s1700, %s1708
          %s1710 = sadd.s32 %s31, %s30
          %s1711 = smul.addr %s1710, 128
          %s1712 = scalar_lea.hbm %s10, %s1711
          %s1714 = sshll.u32 %s1703, 4
          %s1715 = int_to_ptr.vmem [resolvable:$true] %s1714
          %1717 = dma.vmem_to_hbm [thread:$0]  %s1715, 128, %s1712, %s1700
        $region76: #{tpu_custom_call.1} parent=59 // pred_fallthru
          _
      $region60: #{tpu_custom_call.1} parent=5 // pred_fallthru
        _
      %p1718 = scmp.le.s32.totalorder 2, %s21
      // Predicated region
      $region77: #{tpu_custom_call.1} parent=5 // pred_check
        %p1719 = pneg %p1718
      $region78: #{tpu_custom_call.1} parent=5 // pred_check_branch
        %1721 = sbr.rel (%p1719) target = $region80
      $region79: #{tpu_custom_call.1} parent=5 // pred_region
        %s1722 = ssub.s32 %s21, 2
        // Predicated region
        $region81: #{tpu_custom_call.1} parent=79 // pred_check
          %p1723 = pneg %p286
        $region82: #{tpu_custom_call.1} parent=79 // pred_check_branch
          %1725 = sbr.rel (%p1723) target = $region84
        $region83: #{tpu_custom_call.1} parent=79 // pred_region
          %s1726 = sand.u32 %s271, 1
          %s1727 = scalar_lea.sflag [#allocation5], %s1726
          %s1728 = sand.u32 %s271, 1
          %s1729 = smul.addr %s1728, 8
          %s1730 = scalar_lea.vmem [#allocation9], %s1729
          %1731 = dma.done %s1727, 128
        $region84: #{tpu_custom_call.1} parent=79 // pred_fallthru
          _
      $region80: #{tpu_custom_call.1} parent=5 // pred_fallthru
        _
    $region6: #{tpu_custom_call.1} parent=1 // loop_footer
      %s25 = sadd.s32 1, %s21
    $region7: #{tpu_custom_call.1} parent=1 // loop_footer_branch
      %20 = sbr.rel target = $region3
    $region8: #{tpu_custom_call.1} parent=1 // loop_exit
      _
    %1732 = vsyncpa [#allocation4], 1
    %s1733 = scalar_lea.sflag [#allocation4], 1
    %1734 = vsyncpa %s1733, 1
    %1735 = vsyncpa [#allocation7], 1
    %1736 = vsyncpa [#allocation5], 1
    %s1737 = scalar_lea.sflag [#allocation5], 1
    %1738 = vsyncpa %s1737, 1

</llo_original>
